<compile_context>
chip_gen: v5e
topology: v5e:2x2
jax: 0.10.0
libtpu: 0.0.40
codegen_flags: <defaults>
</compile_context>

<pallas_src>
import jax
import jax.numpy as jnp
from jax import lax
from jax.experimental import pallas as pl
from jax.experimental.pallas import tpu as pltpu

LANES = 128


def _round_up(n, m=LANES):
    return ((n + m - 1) // m) * m


def tlstm_kernel(x_ref, wih_ref, whh_ref, b_ref, wfc_ref, bfc_ref,
                 out_ref, xp_scr, hs_scr):
    """All refs are full-array VMEM tiles (no grid).

    x_ref   : (S, Ip)      input sequence, lane-padded
    wih_ref : (Ip, 4Hp)    LSTM input weights, transposed, gate order [i|f|g|o],
                           each gate block zero-padded to Hp columns
    whh_ref : (Hp, 4Hp)    LSTM recurrent weights, transposed, padded likewise
    b_ref   : (1, 4Hp)     b_ih + b_hh, padded per-gate
    wfc_ref : (Hp, Op)     fc weight, transposed, zero-padded
    bfc_ref : (1, Op)      fc bias, zero-padded
    out_ref : (S, O)       softmax(tag_space)  (narrow final store only)
    xp_scr  : (S, 4Hp)     precomputed x @ W_ih^T + b
    hs_scr  : (S, Hp)      per-step hidden states (lstm_out)
    """
    S = x_ref.shape[0]
    Hp = whh_ref.shape[0]
    Op = wfc_ref.shape[1]
    O = out_ref.shape[1]

    # Input projection for every timestep in one lane-dense MXU matmul.
    xp_scr[...] = (
        jnp.dot(x_ref[...], wih_ref[...], preferred_element_type=jnp.float32)
        + b_ref[...]
    )

    def gate_act(gates):
        # Two full-width transcendental passes (EUP), then free lane-aligned
        # 128-wide slices -- no masked sub-vreg EUP ops, no cross-lane moves.
        sg = jax.nn.sigmoid(gates)
        tg = jnp.tanh(gates)
        i_g = sg[:, 0 * Hp:1 * Hp]
        f_g = sg[:, 1 * Hp:2 * Hp]
        g_g = tg[:, 2 * Hp:3 * Hp]
        o_g = sg[:, 3 * Hp:4 * Hp]
        return i_g, f_g, g_g, o_g

    # ---- peeled step t = 0: h0 = c0 = 0 -> gates = xp[0], f*c0 == 0 ----------
    i_g, f_g, g_g, o_g = gate_act(xp_scr[pl.ds(0, 1), :])
    c = i_g * g_g
    h = o_g * jnp.tanh(c)
    hs_scr[pl.ds(0, 1), :] = h

    # ---- fully unrolled recurrence for t = 1 .. S-1 (h, c live in vregs) -----
    for t in range(1, S):
        gates = xp_scr[pl.ds(t, 1), :] + jnp.dot(
            h, whh_ref[...], preferred_element_type=jnp.float32)
        i_g, f_g, g_g, o_g = gate_act(gates)
        c = f_g * c + i_g * g_g
        h = o_g * jnp.tanh(c)
        hs_scr[pl.ds(t, 1), :] = h

    # ---- fc + softmax over dim=1, computed lane-dense on Op=128 columns ------
    logits = (
        jnp.dot(hs_scr[...], wfc_ref[...], preferred_element_type=jnp.float32)
        + bfc_ref[...]
    )
    col = lax.broadcasted_iota(jnp.int32, (S, Op), 1)
    logits = jnp.where(col < O, logits, -1e30)        # mask padded logit lanes
    m = jnp.max(logits, axis=1, keepdims=True)
    e = jnp.exp(logits - m)
    inv = pl.reciprocal(jnp.sum(e, axis=1, keepdims=True), approx=True)
    out_ref[...] = (e * inv)[:, :O]                   # narrow final store only


def tlstm_forward(x, kernel_params, dims):
    """x: (seq_len, input_dim) float32 -> (seq_len, output_dim) softmax scores."""
    wih_p, whh_p, b_p, wfc_p, bfc_p = kernel_params
    S, I = x.shape
    Ip, Hp, O = dims["Ip"], dims["Hp"], dims["O"]
    x_p = jnp.pad(x, ((0, 0), (0, Ip - I)))           # lane-dense input slab
    return pl.pallas_call(
        tlstm_kernel,
        out_shape=jax.ShapeDtypeStruct((S, O), jnp.float32),
        scratch_shapes=[
            pltpu.VMEM((S, 4 * Hp), jnp.float32),     # xp_scr
            pltpu.VMEM((S, Hp), jnp.float32),         # hs_scr (lstm_out)
        ],
    )(x_p, wih_p, whh_p, b_p, wfc_p, bfc_p)


def init_torch_params(key, input_dim, hidden_dim, output_dim):
    """PyTorch-shaped synthetic params: nn.LSTM + nn.Linear layouts."""
    k = jax.random.split(key, 6)
    s = 1.0 / jnp.sqrt(hidden_dim)
    w_ih = jax.random.uniform(k[0], (4 * hidden_dim, input_dim),
                              minval=-s, maxval=s, dtype=jnp.float32)
    w_hh = jax.random.uniform(k[1], (4 * hidden_dim, hidden_dim),
                              minval=-s, maxval=s, dtype=jnp.float32)
    b_ih = jax.random.uniform(k[2], (4 * hidden_dim,),
                              minval=-s, maxval=s, dtype=jnp.float32)
    b_hh = jax.random.uniform(k[3], (4 * hidden_dim,),
                              minval=-s, maxval=s, dtype=jnp.float32)
    w_fc = jax.random.uniform(k[4], (output_dim, hidden_dim),
                              minval=-s, maxval=s, dtype=jnp.float32)
    b_fc = jax.random.uniform(k[5], (output_dim,),
                              minval=-s, maxval=s, dtype=jnp.float32)
    return (w_ih, w_hh, b_ih, b_hh, w_fc, b_fc)


def pack_params_for_kernel(raw):
    """Transpose + zero-pad every dim to 128 lanes (bit-preserving padding)."""
    w_ih, w_hh, b_ih, b_hh, w_fc, b_fc = raw
    H4, I = w_ih.shape
    H = H4 // 4
    O = w_fc.shape[0]
    Ip, Hp, Op = _round_up(I), _round_up(H), _round_up(O)

    def pad_gate_blocks(w, in_pad):
        # w: (4H, in_dim) -> (4Hp, in_pad); each [i|f|g|o] block padded to Hp rows
        in_dim = w.shape[1]
        blocks = [jnp.pad(w[k * H:(k + 1) * H, :],
                          ((0, Hp - H), (0, in_pad - in_dim)))
                  for k in range(4)]
        return jnp.concatenate(blocks, axis=0)

    wih_p = pad_gate_blocks(w_ih, Ip).T                      # (Ip, 4Hp)
    whh_p = pad_gate_blocks(w_hh, Hp).T                      # (Hp, 4Hp)
    b = b_ih + b_hh
    b_p = jnp.concatenate(
        [jnp.pad(b[k * H:(k + 1) * H], (0, Hp - H)) for k in range(4)])[None, :]
    wfc_p = jnp.pad(w_fc, ((0, Op - O), (0, Hp - H))).T      # (Hp, Op)
    bfc_p = jnp.pad(b_fc, (0, Op - O))[None, :]              # (1, Op)
    dims = dict(I=I, H=H, O=O, Ip=Ip, Hp=Hp, Op=Op)
    return (wih_p, whh_p, b_p, wfc_p, bfc_p), dims


def tlstm_reference(x, raw):
    """Pure-JAX reference (lax.scan) mirroring torch nn.LSTM + Linear + softmax."""
    w_ih, w_hh, b_ih, b_hh, w_fc, b_fc = raw
    H = w_hh.shape[1]
    xp = x @ w_ih.T + (b_ih + b_hh)

    def step(carry, xp_t):
        h, c = carry
        gates = xp_t + h @ w_hh.T
        i = jax.nn.sigmoid(gates[0 * H:1 * H])
        f = jax.nn.sigmoid(gates[1 * H:2 * H])
        g = jnp.tanh(gates[2 * H:3 * H])
        o = jax.nn.sigmoid(gates[3 * H:4 * H])
        c = f * c + i * g
        h = o * jnp.tanh(c)
        return (h, c), h

    h0 = jnp.zeros((H,), jnp.float32)
    (_, _), hs = lax.scan(step, (h0, h0), xp)
    logits = hs @ w_fc.T + b_fc
    return jax.nn.softmax(logits, axis=1)


if __name__ == "__main__":
    SEQ_LEN, INPUT_DIM, HIDDEN_DIM, OUTPUT_DIM = 8, 16, 32, 8

    key = jax.random.PRNGKey(0)
    k_x, k_p = jax.random.split(key)
    x = jax.random.normal(k_x, (SEQ_LEN, INPUT_DIM), dtype=jnp.float32)
    raw_params = init_torch_params(k_p, INPUT_DIM, HIDDEN_DIM, OUTPUT_DIM)
    kernel_params, dims = pack_params_for_kernel(raw_params)

    out = jax.block_until_ready(tlstm_forward(x, kernel_params, dims))
    ref = jax.block_until_ready(tlstm_reference(x, raw_params))

    assert out.shape == (SEQ_LEN, OUTPUT_DIM)
    # tolerance 1e-3: pl.reciprocal(approx=True) has ~2^-12 relative error.
    assert jnp.allclose(out, ref, atol=1e-3, rtol=1e-3), "mismatch vs reference"

    print("KERNEL_OK")
</pallas_src>

<mosaic_0001>
module attributes {stable_mosaic.version = 11 : i64} {
  func.func @tlstm_kernel(%arg0: memref<8x128xf32, #tpu.memory_space<vmem>>, %arg1: memref<128x512xf32, #tpu.memory_space<vmem>>, %arg2: memref<128x512xf32, #tpu.memory_space<vmem>>, %arg3: memref<1x512xf32, #tpu.memory_space<vmem>>, %arg4: memref<128x128xf32, #tpu.memory_space<vmem>>, %arg5: memref<1x128xf32, #tpu.memory_space<vmem>>, %arg6: memref<8x8xf32, #tpu.memory_space<vmem>>, %arg7: memref<8x512xf32, #tpu.memory_space<vmem>>, %arg8: memref<8x128xf32, #tpu.memory_space<vmem>>) attributes {dimension_semantics = [], scalar_prefetch = 0 : i64, scratch_operands = 2 : i64, tpu.core_type = #tpu.core_type<tc>} {
    %c0 = arith.constant 0 : index
    %c0_0 = arith.constant 0 : index
    %0 = vector.load %arg0[%c0, %c0_0] : memref<8x128xf32, #tpu.memory_space<vmem>>, vector<8x128xf32>
    %c0_1 = arith.constant 0 : index
    %c0_2 = arith.constant 0 : index
    %1 = vector.load %arg1[%c0_1, %c0_2] : memref<128x512xf32, #tpu.memory_space<vmem>>, vector<128x512xf32>
    %cst = arith.constant dense<0.000000e+00> : vector<8x512xf32>
    %2 = tpu.matmul %0, %1, %cst {dimension_numbers = #tpu.dot_dimension_numbers<[1], [0], [0], [1], [0, 0, 1, 1], [], []>} : vector<8x128xf32>, vector<128x512xf32>, vector<8x512xf32> -> vector<8x512xf32>
    %c0_3 = arith.constant 0 : index
    %c0_4 = arith.constant 0 : index
    %3 = vector.load %arg3[%c0_3, %c0_4] : memref<1x512xf32, #tpu.memory_space<vmem>>, vector<1x512xf32>
    %4 = vector.broadcast %3 : vector<1x512xf32> to vector<8x512xf32>
    %5 = arith.addf %2, %4 : vector<8x512xf32>
    %c0_5 = arith.constant 0 : index
    %c0_6 = arith.constant 0 : index
    %6 = vector.load %arg7[%c0_5, %c0_6] : memref<8x512xf32, #tpu.memory_space<vmem>>, vector<8x512xf32>
    tpu.vector_store %arg7[%c0_5, %c0_6], %5 {strides = array<i32>} : memref<8x512xf32, #tpu.memory_space<vmem>>, vector<8x512xf32>,
    %c0_7 = arith.constant 0 : index
    %c0_8 = arith.constant 0 : index
    %7 = vector.load %arg7[%c0_7, %c0_8] : memref<8x512xf32, #tpu.memory_space<vmem>>, vector<1x512xf32>
    %8 = arith.negf %7 : vector<1x512xf32>
    %9 = math.exp %8 : vector<1x512xf32>
    %cst_9 = arith.constant 1.000000e+00 : f32
    %10 = vector.broadcast %cst_9 : f32 to vector<1x512xf32>
    %11 = arith.addf %10, %9 : vector<1x512xf32>
    %12 = arith.divf %10, %11 : vector<1x512xf32>
    %13 = math.tanh %7 : vector<1x512xf32>
    %14 = vector.extract_strided_slice %12 {offsets = [0, 0], sizes = [1, 128], strides = [1, 1]} : vector<1x512xf32> to vector<1x128xf32>
    %15 = vector.extract_strided_slice %13 {offsets = [0, 256], sizes = [1, 128], strides = [1, 1]} : vector<1x512xf32> to vector<1x128xf32>
    %16 = vector.extract_strided_slice %12 {offsets = [0, 384], sizes = [1, 128], strides = [1, 1]} : vector<1x512xf32> to vector<1x128xf32>
    %17 = arith.mulf %14, %15 : vector<1x128xf32>
    %18 = math.tanh %17 : vector<1x128xf32>
    %19 = arith.mulf %16, %18 : vector<1x128xf32>
    %c0_10 = arith.constant 0 : index
    %c0_11 = arith.constant 0 : index
    %20 = vector.load %arg8[%c0_10, %c0_11] : memref<8x128xf32, #tpu.memory_space<vmem>>, vector<1x128xf32>
    tpu.vector_store %arg8[%c0_10, %c0_11], %19 {strides = array<i32>} : memref<8x128xf32, #tpu.memory_space<vmem>>, vector<1x128xf32>,
    %c1 = arith.constant 1 : index
    %c0_12 = arith.constant 0 : index
    %21 = vector.load %arg7[%c1, %c0_12] : memref<8x512xf32, #tpu.memory_space<vmem>>, vector<1x512xf32>
    %c0_13 = arith.constant 0 : index
    %c0_14 = arith.constant 0 : index
    %22 = vector.load %arg2[%c0_13, %c0_14] : memref<128x512xf32, #tpu.memory_space<vmem>>, vector<128x512xf32>
    %cst_15 = arith.constant dense<0.000000e+00> : vector<1x512xf32>
    %23 = tpu.matmul %19, %22, %cst_15 {dimension_numbers = #tpu.dot_dimension_numbers<[1], [0], [0], [1], [0, 0, 1, 1], [], []>} : vector<1x128xf32>, vector<128x512xf32>, vector<1x512xf32> -> vector<1x512xf32>
    %24 = arith.addf %21, %23 : vector<1x512xf32>
    %25 = arith.negf %24 : vector<1x512xf32>
    %26 = math.exp %25 : vector<1x512xf32>
    %cst_16 = arith.constant 1.000000e+00 : f32
    %27 = vector.broadcast %cst_16 : f32 to vector<1x512xf32>
    %28 = arith.addf %27, %26 : vector<1x512xf32>
    %29 = arith.divf %27, %28 : vector<1x512xf32>
    %30 = math.tanh %24 : vector<1x512xf32>
    %31 = vector.extract_strided_slice %29 {offsets = [0, 0], sizes = [1, 128], strides = [1, 1]} : vector<1x512xf32> to vector<1x128xf32>
    %32 = vector.extract_strided_slice %29 {offsets = [0, 128], sizes = [1, 128], strides = [1, 1]} : vector<1x512xf32> to vector<1x128xf32>
    %33 = vector.extract_strided_slice %30 {offsets = [0, 256], sizes = [1, 128], strides = [1, 1]} : vector<1x512xf32> to vector<1x128xf32>
    %34 = vector.extract_strided_slice %29 {offsets = [0, 384], sizes = [1, 128], strides = [1, 1]} : vector<1x512xf32> to vector<1x128xf32>
    %35 = arith.mulf %32, %17 : vector<1x128xf32>
    %36 = arith.mulf %31, %33 : vector<1x128xf32>
    %37 = arith.addf %35, %36 : vector<1x128xf32>
    %38 = math.tanh %37 : vector<1x128xf32>
    %39 = arith.mulf %34, %38 : vector<1x128xf32>
    %c1_17 = arith.constant 1 : index
    %c0_18 = arith.constant 0 : index
    %40 = vector.load %arg8[%c1_17, %c0_18] : memref<8x128xf32, #tpu.memory_space<vmem>>, vector<1x128xf32>
    tpu.vector_store %arg8[%c1_17, %c0_18], %39 {strides = array<i32>} : memref<8x128xf32, #tpu.memory_space<vmem>>, vector<1x128xf32>,
    %c2 = arith.constant 2 : index
    %c0_19 = arith.constant 0 : index
    %41 = vector.load %arg7[%c2, %c0_19] : memref<8x512xf32, #tpu.memory_space<vmem>>, vector<1x512xf32>
    %c0_20 = arith.constant 0 : index
    %c0_21 = arith.constant 0 : index
    %42 = vector.load %arg2[%c0_20, %c0_21] : memref<128x512xf32, #tpu.memory_space<vmem>>, vector<128x512xf32>
    %cst_22 = arith.constant dense<0.000000e+00> : vector<1x512xf32>
    %43 = tpu.matmul %39, %42, %cst_22 {dimension_numbers = #tpu.dot_dimension_numbers<[1], [0], [0], [1], [0, 0, 1, 1], [], []>} : vector<1x128xf32>, vector<128x512xf32>, vector<1x512xf32> -> vector<1x512xf32>
    %44 = arith.addf %41, %43 : vector<1x512xf32>
    %45 = arith.negf %44 : vector<1x512xf32>
    %46 = math.exp %45 : vector<1x512xf32>
    %cst_23 = arith.constant 1.000000e+00 : f32
    %47 = vector.broadcast %cst_23 : f32 to vector<1x512xf32>
    %48 = arith.addf %47, %46 : vector<1x512xf32>
    %49 = arith.divf %47, %48 : vector<1x512xf32>
    %50 = math.tanh %44 : vector<1x512xf32>
    %51 = vector.extract_strided_slice %49 {offsets = [0, 0], sizes = [1, 128], strides = [1, 1]} : vector<1x512xf32> to vector<1x128xf32>
    %52 = vector.extract_strided_slice %49 {offsets = [0, 128], sizes = [1, 128], strides = [1, 1]} : vector<1x512xf32> to vector<1x128xf32>
    %53 = vector.extract_strided_slice %50 {offsets = [0, 256], sizes = [1, 128], strides = [1, 1]} : vector<1x512xf32> to vector<1x128xf32>
    %54 = vector.extract_strided_slice %49 {offsets = [0, 384], sizes = [1, 128], strides = [1, 1]} : vector<1x512xf32> to vector<1x128xf32>
    %55 = arith.mulf %52, %37 : vector<1x128xf32>
    %56 = arith.mulf %51, %53 : vector<1x128xf32>
    %57 = arith.addf %55, %56 : vector<1x128xf32>
    %58 = math.tanh %57 : vector<1x128xf32>
    %59 = arith.mulf %54, %58 : vector<1x128xf32>
    %c2_24 = arith.constant 2 : index
    %c0_25 = arith.constant 0 : index
    %60 = vector.load %arg8[%c2_24, %c0_25] : memref<8x128xf32, #tpu.memory_space<vmem>>, vector<1x128xf32>
    tpu.vector_store %arg8[%c2_24, %c0_25], %59 {strides = array<i32>} : memref<8x128xf32, #tpu.memory_space<vmem>>, vector<1x128xf32>,
    %c3 = arith.constant 3 : index
    %c0_26 = arith.constant 0 : index
    %61 = vector.load %arg7[%c3, %c0_26] : memref<8x512xf32, #tpu.memory_space<vmem>>, vector<1x512xf32>
    %c0_27 = arith.constant 0 : index
    %c0_28 = arith.constant 0 : index
    %62 = vector.load %arg2[%c0_27, %c0_28] : memref<128x512xf32, #tpu.memory_space<vmem>>, vector<128x512xf32>
    %cst_29 = arith.constant dense<0.000000e+00> : vector<1x512xf32>
    %63 = tpu.matmul %59, %62, %cst_29 {dimension_numbers = #tpu.dot_dimension_numbers<[1], [0], [0], [1], [0, 0, 1, 1], [], []>} : vector<1x128xf32>, vector<128x512xf32>, vector<1x512xf32> -> vector<1x512xf32>
    %64 = arith.addf %61, %63 : vector<1x512xf32>
    %65 = arith.negf %64 : vector<1x512xf32>
    %66 = math.exp %65 : vector<1x512xf32>
    %cst_30 = arith.constant 1.000000e+00 : f32
    %67 = vector.broadcast %cst_30 : f32 to vector<1x512xf32>
    %68 = arith.addf %67, %66 : vector<1x512xf32>
    %69 = arith.divf %67, %68 : vector<1x512xf32>
    %70 = math.tanh %64 : vector<1x512xf32>
    %71 = vector.extract_strided_slice %69 {offsets = [0, 0], sizes = [1, 128], strides = [1, 1]} : vector<1x512xf32> to vector<1x128xf32>
    %72 = vector.extract_strided_slice %69 {offsets = [0, 128], sizes = [1, 128], strides = [1, 1]} : vector<1x512xf32> to vector<1x128xf32>
    %73 = vector.extract_strided_slice %70 {offsets = [0, 256], sizes = [1, 128], strides = [1, 1]} : vector<1x512xf32> to vector<1x128xf32>
    %74 = vector.extract_strided_slice %69 {offsets = [0, 384], sizes = [1, 128], strides = [1, 1]} : vector<1x512xf32> to vector<1x128xf32>
    %75 = arith.mulf %72, %57 : vector<1x128xf32>
    %76 = arith.mulf %71, %73 : vector<1x128xf32>
    %77 = arith.addf %75, %76 : vector<1x128xf32>
    %78 = math.tanh %77 : vector<1x128xf32>
    %79 = arith.mulf %74, %78 : vector<1x128xf32>
    %c3_31 = arith.constant 3 : index
    %c0_32 = arith.constant 0 : index
    %80 = vector.load %arg8[%c3_31, %c0_32] : memref<8x128xf32, #tpu.memory_space<vmem>>, vector<1x128xf32>
    tpu.vector_store %arg8[%c3_31, %c0_32], %79 {strides = array<i32>} : memref<8x128xf32, #tpu.memory_space<vmem>>, vector<1x128xf32>,
    %c4 = arith.constant 4 : index
    %c0_33 = arith.constant 0 : index
    %81 = vector.load %arg7[%c4, %c0_33] : memref<8x512xf32, #tpu.memory_space<vmem>>, vector<1x512xf32>
    %c0_34 = arith.constant 0 : index
    %c0_35 = arith.constant 0 : index
    %82 = vector.load %arg2[%c0_34, %c0_35] : memref<128x512xf32, #tpu.memory_space<vmem>>, vector<128x512xf32>
    %cst_36 = arith.constant dense<0.000000e+00> : vector<1x512xf32>
    %83 = tpu.matmul %79, %82, %cst_36 {dimension_numbers = #tpu.dot_dimension_numbers<[1], [0], [0], [1], [0, 0, 1, 1], [], []>} : vector<1x128xf32>, vector<128x512xf32>, vector<1x512xf32> -> vector<1x512xf32>
    %84 = arith.addf %81, %83 : vector<1x512xf32>
    %85 = arith.negf %84 : vector<1x512xf32>
    %86 = math.exp %85 : vector<1x512xf32>
    %cst_37 = arith.constant 1.000000e+00 : f32
    %87 = vector.broadcast %cst_37 : f32 to vector<1x512xf32>
    %88 = arith.addf %87, %86 : vector<1x512xf32>
    %89 = arith.divf %87, %88 : vector<1x512xf32>
    %90 = math.tanh %84 : vector<1x512xf32>
    %91 = vector.extract_strided_slice %89 {offsets = [0, 0], sizes = [1, 128], strides = [1, 1]} : vector<1x512xf32> to vector<1x128xf32>
    %92 = vector.extract_strided_slice %89 {offsets = [0, 128], sizes = [1, 128], strides = [1, 1]} : vector<1x512xf32> to vector<1x128xf32>
    %93 = vector.extract_strided_slice %90 {offsets = [0, 256], sizes = [1, 128], strides = [1, 1]} : vector<1x512xf32> to vector<1x128xf32>
    %94 = vector.extract_strided_slice %89 {offsets = [0, 384], sizes = [1, 128], strides = [1, 1]} : vector<1x512xf32> to vector<1x128xf32>
    %95 = arith.mulf %92, %77 : vector<1x128xf32>
    %96 = arith.mulf %91, %93 : vector<1x128xf32>
    %97 = arith.addf %95, %96 : vector<1x128xf32>
    %98 = math.tanh %97 : vector<1x128xf32>
    %99 = arith.mulf %94, %98 : vector<1x128xf32>
    %c4_38 = arith.constant 4 : index
    %c0_39 = arith.constant 0 : index
    %100 = vector.load %arg8[%c4_38, %c0_39] : memref<8x128xf32, #tpu.memory_space<vmem>>, vector<1x128xf32>
    tpu.vector_store %arg8[%c4_38, %c0_39], %99 {strides = array<i32>} : memref<8x128xf32, #tpu.memory_space<vmem>>, vector<1x128xf32>,
    %c5 = arith.constant 5 : index
    %c0_40 = arith.constant 0 : index
    %101 = vector.load %arg7[%c5, %c0_40] : memref<8x512xf32, #tpu.memory_space<vmem>>, vector<1x512xf32>
    %c0_41 = arith.constant 0 : index
    %c0_42 = arith.constant 0 : index
    %102 = vector.load %arg2[%c0_41, %c0_42] : memref<128x512xf32, #tpu.memory_space<vmem>>, vector<128x512xf32>
    %cst_43 = arith.constant dense<0.000000e+00> : vector<1x512xf32>
    %103 = tpu.matmul %99, %102, %cst_43 {dimension_numbers = #tpu.dot_dimension_numbers<[1], [0], [0], [1], [0, 0, 1, 1], [], []>} : vector<1x128xf32>, vector<128x512xf32>, vector<1x512xf32> -> vector<1x512xf32>
    %104 = arith.addf %101, %103 : vector<1x512xf32>
    %105 = arith.negf %104 : vector<1x512xf32>
    %106 = math.exp %105 : vector<1x512xf32>
    %cst_44 = arith.constant 1.000000e+00 : f32
    %107 = vector.broadcast %cst_44 : f32 to vector<1x512xf32>
    %108 = arith.addf %107, %106 : vector<1x512xf32>
    %109 = arith.divf %107, %108 : vector<1x512xf32>
    %110 = math.tanh %104 : vector<1x512xf32>
    %111 = vector.extract_strided_slice %109 {offsets = [0, 0], sizes = [1, 128], strides = [1, 1]} : vector<1x512xf32> to vector<1x128xf32>
    %112 = vector.extract_strided_slice %109 {offsets = [0, 128], sizes = [1, 128], strides = [1, 1]} : vector<1x512xf32> to vector<1x128xf32>
    %113 = vector.extract_strided_slice %110 {offsets = [0, 256], sizes = [1, 128], strides = [1, 1]} : vector<1x512xf32> to vector<1x128xf32>
    %114 = vector.extract_strided_slice %109 {offsets = [0, 384], sizes = [1, 128], strides = [1, 1]} : vector<1x512xf32> to vector<1x128xf32>
    %115 = arith.mulf %112, %97 : vector<1x128xf32>
    %116 = arith.mulf %111, %113 : vector<1x128xf32>
    %117 = arith.addf %115, %116 : vector<1x128xf32>
    %118 = math.tanh %117 : vector<1x128xf32>
    %119 = arith.mulf %114, %118 : vector<1x128xf32>
    %c5_45 = arith.constant 5 : index
    %c0_46 = arith.constant 0 : index
    %120 = vector.load %arg8[%c5_45, %c0_46] : memref<8x128xf32, #tpu.memory_space<vmem>>, vector<1x128xf32>
    tpu.vector_store %arg8[%c5_45, %c0_46], %119 {strides = array<i32>} : memref<8x128xf32, #tpu.memory_space<vmem>>, vector<1x128xf32>,
    %c6 = arith.constant 6 : index
    %c0_47 = arith.constant 0 : index
    %121 = vector.load %arg7[%c6, %c0_47] : memref<8x512xf32, #tpu.memory_space<vmem>>, vector<1x512xf32>
    %c0_48 = arith.constant 0 : index
    %c0_49 = arith.constant 0 : index
    %122 = vector.load %arg2[%c0_48, %c0_49] : memref<128x512xf32, #tpu.memory_space<vmem>>, vector<128x512xf32>
    %cst_50 = arith.constant dense<0.000000e+00> : vector<1x512xf32>
    %123 = tpu.matmul %119, %122, %cst_50 {dimension_numbers = #tpu.dot_dimension_numbers<[1], [0], [0], [1], [0, 0, 1, 1], [], []>} : vector<1x128xf32>, vector<128x512xf32>, vector<1x512xf32> -> vector<1x512xf32>
    %124 = arith.addf %121, %123 : vector<1x512xf32>
    %125 = arith.negf %124 : vector<1x512xf32>
    %126 = math.exp %125 : vector<1x512xf32>
    %cst_51 = arith.constant 1.000000e+00 : f32
    %127 = vector.broadcast %cst_51 : f32 to vector<1x512xf32>
    %128 = arith.addf %127, %126 : vector<1x512xf32>
    %129 = arith.divf %127, %128 : vector<1x512xf32>
    %130 = math.tanh %124 : vector<1x512xf32>
    %131 = vector.extract_strided_slice %129 {offsets = [0, 0], sizes = [1, 128], strides = [1, 1]} : vector<1x512xf32> to vector<1x128xf32>
    %132 = vector.extract_strided_slice %129 {offsets = [0, 128], sizes = [1, 128], strides = [1, 1]} : vector<1x512xf32> to vector<1x128xf32>
    %133 = vector.extract_strided_slice %130 {offsets = [0, 256], sizes = [1, 128], strides = [1, 1]} : vector<1x512xf32> to vector<1x128xf32>
    %134 = vector.extract_strided_slice %129 {offsets = [0, 384], sizes = [1, 128], strides = [1, 1]} : vector<1x512xf32> to vector<1x128xf32>
    %135 = arith.mulf %132, %117 : vector<1x128xf32>
    %136 = arith.mulf %131, %133 : vector<1x128xf32>
    %137 = arith.addf %135, %136 : vector<1x128xf32>
    %138 = math.tanh %137 : vector<1x128xf32>
    %139 = arith.mulf %134, %138 : vector<1x128xf32>
    %c6_52 = arith.constant 6 : index
    %c0_53 = arith.constant 0 : index
    %140 = vector.load %arg8[%c6_52, %c0_53] : memref<8x128xf32, #tpu.memory_space<vmem>>, vector<1x128xf32>
    tpu.vector_store %arg8[%c6_52, %c0_53], %139 {strides = array<i32>} : memref<8x128xf32, #tpu.memory_space<vmem>>, vector<1x128xf32>,
    %c7 = arith.constant 7 : index
    %c0_54 = arith.constant 0 : index
    %141 = vector.load %arg7[%c7, %c0_54] : memref<8x512xf32, #tpu.memory_space<vmem>>, vector<1x512xf32>
    %c0_55 = arith.constant 0 : index
    %c0_56 = arith.constant 0 : index
    %142 = vector.load %arg2[%c0_55, %c0_56] : memref<128x512xf32, #tpu.memory_space<vmem>>, vector<128x512xf32>
    %cst_57 = arith.constant dense<0.000000e+00> : vector<1x512xf32>
    %143 = tpu.matmul %139, %142, %cst_57 {dimension_numbers = #tpu.dot_dimension_numbers<[1], [0], [0], [1], [0, 0, 1, 1], [], []>} : vector<1x128xf32>, vector<128x512xf32>, vector<1x512xf32> -> vector<1x512xf32>
    %144 = arith.addf %141, %143 : vector<1x512xf32>
    %145 = arith.negf %144 : vector<1x512xf32>
    %146 = math.exp %145 : vector<1x512xf32>
    %cst_58 = arith.constant 1.000000e+00 : f32
    %147 = vector.broadcast %cst_58 : f32 to vector<1x512xf32>
    %148 = arith.addf %147, %146 : vector<1x512xf32>
    %149 = arith.divf %147, %148 : vector<1x512xf32>
    %150 = math.tanh %144 : vector<1x512xf32>
    %151 = vector.extract_strided_slice %149 {offsets = [0, 0], sizes = [1, 128], strides = [1, 1]} : vector<1x512xf32> to vector<1x128xf32>
    %152 = vector.extract_strided_slice %149 {offsets = [0, 128], sizes = [1, 128], strides = [1, 1]} : vector<1x512xf32> to vector<1x128xf32>
    %153 = vector.extract_strided_slice %150 {offsets = [0, 256], sizes = [1, 128], strides = [1, 1]} : vector<1x512xf32> to vector<1x128xf32>
    %154 = vector.extract_strided_slice %149 {offsets = [0, 384], sizes = [1, 128], strides = [1, 1]} : vector<1x512xf32> to vector<1x128xf32>
    %155 = arith.mulf %152, %137 : vector<1x128xf32>
    %156 = arith.mulf %151, %153 : vector<1x128xf32>
    %157 = arith.addf %155, %156 : vector<1x128xf32>
    %158 = math.tanh %157 : vector<1x128xf32>
    %159 = arith.mulf %154, %158 : vector<1x128xf32>
    %c7_59 = arith.constant 7 : index
    %c0_60 = arith.constant 0 : index
    %160 = vector.load %arg8[%c7_59, %c0_60] : memref<8x128xf32, #tpu.memory_space<vmem>>, vector<1x128xf32>
    tpu.vector_store %arg8[%c7_59, %c0_60], %159 {strides = array<i32>} : memref<8x128xf32, #tpu.memory_space<vmem>>, vector<1x128xf32>,
    %c0_61 = arith.constant 0 : index
    %c0_62 = arith.constant 0 : index
    %161 = vector.load %arg8[%c0_61, %c0_62] : memref<8x128xf32, #tpu.memory_space<vmem>>, vector<8x128xf32>
    %c0_63 = arith.constant 0 : index
    %c0_64 = arith.constant 0 : index
    %162 = vector.load %arg4[%c0_63, %c0_64] : memref<128x128xf32, #tpu.memory_space<vmem>>, vector<128x128xf32>
    %cst_65 = arith.constant dense<0.000000e+00> : vector<8x128xf32>
    %163 = tpu.matmul %161, %162, %cst_65 {dimension_numbers = #tpu.dot_dimension_numbers<[1], [0], [0], [1], [0, 0, 1, 1], [], []>} : vector<8x128xf32>, vector<128x128xf32>, vector<8x128xf32> -> vector<8x128xf32>
    %c0_66 = arith.constant 0 : index
    %c0_67 = arith.constant 0 : index
    %164 = vector.load %arg5[%c0_66, %c0_67] : memref<1x128xf32, #tpu.memory_space<vmem>>, vector<1x128xf32>
    %165 = vector.broadcast %164 : vector<1x128xf32> to vector<8x128xf32>
    %166 = arith.addf %163, %165 : vector<8x128xf32>
    %167 = tpu.iota {dimensions = array<i32: 1>} : vector<8x128xi32>
    %c8_i32 = arith.constant 8 : i32
    %168 = vector.broadcast %c8_i32 : i32 to vector<8x128xi32>
    %169 = arith.cmpi slt, %167, %168 : vector<8x128xi32>
    %cst_68 = arith.constant -1.000000e+30 : f32
    %170 = vector.broadcast %cst_68 : f32 to vector<8x128xf32>
    %171 = arith.select %169, %166, %170 : vector<8x128xi1>, vector<8x128xf32>
    %cst_69 = arith.constant dense<0xFF800000> : vector<8xf32>
    %172 = vector.multi_reduction <maximumf>, %171, %cst_69 [1] : vector<8x128xf32> to vector<8xf32>
    %173 = vector.shape_cast %172 : vector<8xf32> to vector<8x1xf32>
    %174 = vector.broadcast %173 : vector<8x1xf32> to vector<8x128xf32>
    %175 = arith.subf %171, %174 : vector<8x128xf32>
    %176 = math.exp %175 : vector<8x128xf32>
    %cst_70 = arith.constant dense<0.000000e+00> : vector<8xf32>
    %177 = vector.multi_reduction <add>, %176, %cst_70 [1] : vector<8x128xf32> to vector<8xf32>
    %178 = vector.shape_cast %177 : vector<8xf32> to vector<8x1xf32>
    %179 = tpu.reciprocal %178 {approx = true} : vector<8x1xf32> -> vector<8x1xf32>
    %180 = vector.broadcast %179 : vector<8x1xf32> to vector<8x128xf32>
    %181 = arith.mulf %176, %180 : vector<8x128xf32>
    %182 = vector.extract_strided_slice %181 {offsets = [0, 0], sizes = [8, 8], strides = [1, 1]} : vector<8x128xf32> to vector<8x8xf32>
    %c0_71 = arith.constant 0 : index
    %c0_72 = arith.constant 0 : index
    %183 = vector.load %arg6[%c0_71, %c0_72] : memref<8x8xf32, #tpu.memory_space<vmem>>, vector<8x8xf32>
    tpu.vector_store %arg6[%c0_71, %c0_72], %182 {strides = array<i32>} : memref<8x8xf32, #tpu.memory_space<vmem>>, vector<8x8xf32>,
    return
  }
}

</mosaic_0001>

<llo_original>
// kernel: tpu_custom_call.1
$region0: #{tpu_custom_call.1}
  #allocation0 [shape = 'u32[]', space=smem, size = 0x4, offset = 0x4, fixed_abs, tag = 'smem constant byte address 0x4 - core index']
  #allocation1 [shape = 'u32[72,128]{1,0:T(1,128)}', space=vmem, size = 0x9000, scoped, tag = 'internal scratch']
  #allocation2 [shape = 'f32[8,512]{1,0:T(8,128)}', space=vmem, size = 0x4000, scoped, tag = 'scratch operand']
  #allocation3 [shape = 'f32[8,128]{1,0:T(8,128)}', space=vmem, size = 0x1000, scoped, tag = 'scratch operand']
  %s0 = inlined_call_operand.hbm [shape: f32[8,128], index: 0, kind: input, shape index: {}]
  %s1 = inlined_call_operand.hbm [shape: f32[128,512], index: 1, kind: input, shape index: {}]
  %s2 = inlined_call_operand.hbm [shape: f32[128,512], index: 2, kind: input, shape index: {}]
  %s3 = inlined_call_operand.hbm [shape: f32[1,512], index: 3, kind: input, shape index: {}]
  %s4 = inlined_call_operand.hbm [shape: f32[128,128], index: 4, kind: input, shape index: {}]
  %s5 = inlined_call_operand.vmem [shape: f32[1,128], index: 5, kind: input, shape index: {}]
  %s6 = inlined_call_operand.hbm [shape: f32[8,8], index: 6, kind: output, shape index: {}]
  %s7 = sld [smem:[#allocation0]]
  $region54: #{tpu_custom_call.1} parent=0
    _
  %s9 = ssub.s32 1, %s7
  %s10 = scalar_select 0, %s9, %s7
  $region1: #{tpu_custom_call.1} parent=0
    #allocation4 [shape = 'u8[4096]{0}', space=vmem, size = 0x1000, scoped, tag = 'input window, operand 0, single buffered']
    #allocation5 [shape = 's32[1]{0}', space=sflag, size = 0x4, scoped, tag = 'scoped memory for tpu_custom_call.1']
    #allocation6 [shape = 's32[1]{0}', space=sflag, size = 0x4, scoped, tag = 'scoped memory for tpu_custom_call.1']
    #allocation7 [shape = 'u8[262144]{0}', space=vmem, size = 0x40000, scoped, tag = 'input window, operand 1, single buffered']
    #allocation8 [shape = 's32[1]{0}', space=sflag, size = 0x4, scoped, tag = 'scoped memory for tpu_custom_call.1']
    #allocation9 [shape = 'u8[262144]{0}', space=vmem, size = 0x40000, scoped, tag = 'input window, operand 2, single buffered']
    #allocation10 [shape = 'u8[2048]{0}', space=vmem, size = 0x800, scoped, tag = 'input window, operand 3, single buffered']
    #allocation11 [shape = 's32[1]{0}', space=sflag, size = 0x4, scoped, tag = 'scoped memory for tpu_custom_call.1']
    #allocation12 [shape = 'u8[65536]{0}', space=vmem, size = 0x10000, scoped, tag = 'input window, operand 4, single buffered']
    #allocation13 [shape = 'u8[4096]{0}', space=vmem, size = 0x1000, scoped, tag = 'output window, operand 0, single buffered']
    %11 = vsyncpa [#allocation5], 0
    %12 = vsyncpa [#allocation8], 0
    %13 = vsyncpa [#allocation11], 0
    %14 = vsyncpa [#allocation6], 0
    // Predicated region
    $region2: #{tpu_custom_call.1} parent=1 // pred_check
      _
    $region3: #{tpu_custom_call.1} parent=1 // pred_check_branch
      %16 = sbr.rel (0) target = $region5
    $region4: #{tpu_custom_call.1} parent=1 // pred_region
      %18 = vsyncadd [#allocation5], 0
      %s20 = sshll.u32 %s0, 4
      %s21 = int_to_ptr.hbm [resolvable:$true] %s20
      %s22 = sshll.u32 [#allocation4], 4
      %s23 = int_to_ptr.vmem [resolvable:$true] %s22
      %25 = dma.hbm_to_vmem [thread:$0]  %s21, 128, %s23, [#allocation5]
    $region5: #{tpu_custom_call.1} parent=1 // pred_fallthru
      _
    // Predicated region
    $region6: #{tpu_custom_call.1} parent=1 // pred_check
      _
    $region7: #{tpu_custom_call.1} parent=1 // pred_check_branch
      %27 = sbr.rel (0) target = $region9
    $region8: #{tpu_custom_call.1} parent=1 // pred_region
      %29 = vsyncadd [#allocation8], 0
      %s30 = sshll.u32 %s1, 4
      %s31 = int_to_ptr.hbm [resolvable:$true] %s30
      %s32 = sshll.u32 [#allocation7], 4
      %s33 = int_to_ptr.vmem [resolvable:$true] %s32
      %38 = dma.hbm_to_vmem [thread:$0]  %s31, 8192, %s33, [#allocation8], 512, 512, 32
    $region9: #{tpu_custom_call.1} parent=1 // pred_fallthru
      _
    // Predicated region
    $region10: #{tpu_custom_call.1} parent=1 // pred_check
      _
    $region11: #{tpu_custom_call.1} parent=1 // pred_check_branch
      %40 = sbr.rel (0) target = $region13
    $region12: #{tpu_custom_call.1} parent=1 // pred_region
      %42 = vsyncadd [#allocation8], 0
      %s43 = sshll.u32 %s2, 4
      %s44 = int_to_ptr.hbm [resolvable:$true] %s43
      %s45 = sshll.u32 [#allocation9], 4
      %s46 = int_to_ptr.vmem [resolvable:$true] %s45
      %51 = dma.hbm_to_vmem [thread:$0]  %s44, 8192, %s46, [#allocation8], 512, 512, 32
    $region13: #{tpu_custom_call.1} parent=1 // pred_fallthru
      _
    // Predicated region
    $region14: #{tpu_custom_call.1} parent=1 // pred_check
      _
    $region15: #{tpu_custom_call.1} parent=1 // pred_check_branch
      %53 = sbr.rel (0) target = $region17
    $region16: #{tpu_custom_call.1} parent=1 // pred_region
      %55 = vsyncadd [#allocation11], 0
      %s57 = sshll.u32 %s3, 4
      %s58 = int_to_ptr.hbm [resolvable:$true] %s57
      %s59 = sshll.u32 [#allocation10], 4
      %s60 = int_to_ptr.vmem [resolvable:$true] %s59
      %62 = dma.hbm_to_vmem [thread:$0]  %s58, 64, %s60, [#allocation11]
    $region17: #{tpu_custom_call.1} parent=1 // pred_fallthru
      _
    // Predicated region
    $region18: #{tpu_custom_call.1} parent=1 // pred_check
      _
    $region19: #{tpu_custom_call.1} parent=1 // pred_check_branch
      %64 = sbr.rel (0) target = $region21
    $region20: #{tpu_custom_call.1} parent=1 // pred_region
      %66 = vsyncadd [#allocation11], 0
      %s67 = sshll.u32 %s4, 4
      %s68 = int_to_ptr.hbm [resolvable:$true] %s67
      %s69 = sshll.u32 [#allocation12], 4
      %s70 = int_to_ptr.vmem [resolvable:$true] %s69
      %75 = dma.hbm_to_vmem [thread:$0]  %s68, 2048, %s70, [#allocation11], 128, 128, 8
    $region21: #{tpu_custom_call.1} parent=1 // pred_fallthru
      _
    // Predicated region
    $region22: #{tpu_custom_call.1} parent=1 // pred_check
      _
    $region23: #{tpu_custom_call.1} parent=1 // pred_check_branch
      %77 = sbr.rel (0) target = $region25
    $region24: #{tpu_custom_call.1} parent=1 // pred_region
      _
    $region25: #{tpu_custom_call.1} parent=1 // pred_fallthru
      _
    // Predicated region
    $region26: #{tpu_custom_call.1} parent=1 // pred_check
      _
    $region27: #{tpu_custom_call.1} parent=1 // pred_check_branch
      %79 = sbr.rel (0) target = $region29
    $region28: #{tpu_custom_call.1} parent=1 // pred_region
      %81 = dma.done [#allocation5], 128
    $region29: #{tpu_custom_call.1} parent=1 // pred_fallthru
      _
    // Predicated region
    $region30: #{tpu_custom_call.1} parent=1 // pred_check
      _
    $region31: #{tpu_custom_call.1} parent=1 // pred_check_branch
      %83 = sbr.rel (0) target = $region33
    $region32: #{tpu_custom_call.1} parent=1 // pred_region
      %85 = dma.done [#allocation8], 8192
    $region33: #{tpu_custom_call.1} parent=1 // pred_fallthru
      _
    // Predicated region
    $region34: #{tpu_custom_call.1} parent=1 // pred_check
      _
    $region35: #{tpu_custom_call.1} parent=1 // pred_check_branch
      %87 = sbr.rel (0) target = $region37
    $region36: #{tpu_custom_call.1} parent=1 // pred_region
      %89 = dma.done [#allocation8], 8192
    $region37: #{tpu_custom_call.1} parent=1 // pred_fallthru
      _
    // Predicated region
    $region38: #{tpu_custom_call.1} parent=1 // pred_check
      _
    $region39: #{tpu_custom_call.1} parent=1 // pred_check_branch
      %91 = sbr.rel (0) target = $region41
    $region40: #{tpu_custom_call.1} parent=1 // pred_region
      %93 = dma.done [#allocation11], 64
    $region41: #{tpu_custom_call.1} parent=1 // pred_fallthru
      _
    // Predicated region
    $region42: #{tpu_custom_call.1} parent=1 // pred_check
      _
    $region43: #{tpu_custom_call.1} parent=1 // pred_check_branch
      %95 = sbr.rel (0) target = $region45
    $region44: #{tpu_custom_call.1} parent=1 // pred_region
      %97 = dma.done [#allocation11], 2048
    $region45: #{tpu_custom_call.1} parent=1 // pred_fallthru
      _
    %v98 = vld [vmem:[#allocation4] sm:$0xff]
    %v99 = vld [vmem:[#allocation7] sm:$0xff]
    %v100 = vld [vmem:[#allocation7 + $0x8] sm:$0xff]
    %v101 = vld [vmem:[#allocation7 + $0x10] sm:$0xff]
    %v102 = vld [vmem:[#allocation7 + $0x18] sm:$0xff]
    %v103 = vld [vmem:[#allocation7 + $0x20] sm:$0xff]
    %v104 = vld [vmem:[#allocation7 + $0x28] sm:$0xff]
    %v105 = vld [vmem:[#allocation7 + $0x30] sm:$0xff]
    %v106 = vld [vmem:[#allocation7 + $0x38] sm:$0xff]
    %v107 = vld [vmem:[#allocation7 + $0x40] sm:$0xff]
    %v108 = vld [vmem:[#allocation7 + $0x48] sm:$0xff]
    %v109 = vld [vmem:[#allocation7 + $0x50] sm:$0xff]
    %v110 = vld [vmem:[#allocation7 + $0x58] sm:$0xff]
    %v111 = vld [vmem:[#allocation7 + $0x60] sm:$0xff]
    %v112 = vld [vmem:[#allocation7 + $0x68] sm:$0xff]
    %v113 = vld [vmem:[#allocation7 + $0x70] sm:$0xff]
    %v114 = vld [vmem:[#allocation7 + $0x78] sm:$0xff]
    %v115 = vld [vmem:[#allocation7 + $0x80] sm:$0xff]
    %v116 = vld [vmem:[#allocation7 + $0x88] sm:$0xff]
    %v117 = vld [vmem:[#allocation7 + $0x90] sm:$0xff]
    %v118 = vld [vmem:[#allocation7 + $0x98] sm:$0xff]
    %v119 = vld [vmem:[#allocation7 + $0xa0] sm:$0xff]
    %v120 = vld [vmem:[#allocation7 + $0xa8] sm:$0xff]
    %v121 = vld [vmem:[#allocation7 + $0xb0] sm:$0xff]
    %v122 = vld [vmem:[#allocation7 + $0xb8] sm:$0xff]
    %v123 = vld [vmem:[#allocation7 + $0xc0] sm:$0xff]
    %v124 = vld [vmem:[#allocation7 + $0xc8] sm:$0xff]
    %v125 = vld [vmem:[#allocation7 + $0xd0] sm:$0xff]
    %v126 = vld [vmem:[#allocation7 + $0xd8] sm:$0xff]
    %v127 = vld [vmem:[#allocation7 + $0xe0] sm:$0xff]
    %v128 = vld [vmem:[#allocation7 + $0xe8] sm:$0xff]
    %v129 = vld [vmem:[#allocation7 + $0xf0] sm:$0xff]
    %v130 = vld [vmem:[#allocation7 + $0xf8] sm:$0xff]
    %v131 = vld [vmem:[#allocation7 + $0x100] sm:$0xff]
    %v132 = vld [vmem:[#allocation7 + $0x108] sm:$0xff]
    %v133 = vld [vmem:[#allocation7 + $0x110] sm:$0xff]
    %v134 = vld [vmem:[#allocation7 + $0x118] sm:$0xff]
    %v135 = vld [vmem:[#allocation7 + $0x120] sm:$0xff]
    %v136 = vld [vmem:[#allocation7 + $0x128] sm:$0xff]
    %v137 = vld [vmem:[#allocation7 + $0x130] sm:$0xff]
    %v138 = vld [vmem:[#allocation7 + $0x138] sm:$0xff]
    %v139 = vld [vmem:[#allocation7 + $0x140] sm:$0xff]
    %v140 = vld [vmem:[#allocation7 + $0x148] sm:$0xff]
    %v141 = vld [vmem:[#allocation7 + $0x150] sm:$0xff]
    %v142 = vld [vmem:[#allocation7 + $0x158] sm:$0xff]
    %v143 = vld [vmem:[#allocation7 + $0x160] sm:$0xff]
    %v144 = vld [vmem:[#allocation7 + $0x168] sm:$0xff]
    %v145 = vld [vmem:[#allocation7 + $0x170] sm:$0xff]
    %v146 = vld [vmem:[#allocation7 + $0x178] sm:$0xff]
    %v147 = vld [vmem:[#allocation7 + $0x180] sm:$0xff]
    %v148 = vld [vmem:[#allocation7 + $0x188] sm:$0xff]
    %v149 = vld [vmem:[#allocation7 + $0x190] sm:$0xff]
    %v150 = vld [vmem:[#allocation7 + $0x198] sm:$0xff]
    %v151 = vld [vmem:[#allocation7 + $0x1a0] sm:$0xff]
    %v152 = vld [vmem:[#allocation7 + $0x1a8] sm:$0xff]
    %v153 = vld [vmem:[#allocation7 + $0x1b0] sm:$0xff]
    %v154 = vld [vmem:[#allocation7 + $0x1b8] sm:$0xff]
    %v155 = vld [vmem:[#allocation7 + $0x1c0] sm:$0xff]
    %v156 = vld [vmem:[#allocation7 + $0x1c8] sm:$0xff]
    %v157 = vld [vmem:[#allocation7 + $0x1d0] sm:$0xff]
    %v158 = vld [vmem:[#allocation7 + $0x1d8] sm:$0xff]
    %v159 = vld [vmem:[#allocation7 + $0x1e0] sm:$0xff]
    %v160 = vld [vmem:[#allocation7 + $0x1e8] sm:$0xff]
    %v161 = vld [vmem:[#allocation7 + $0x1f0] sm:$0xff]
    %v162 = vld [vmem:[#allocation7 + $0x1f8] sm:$0xff]
    %v163 = vld [vmem:[#allocation10] sm:$0xf]
    %v165 = vperm.slane %v163, 0
    %v166 = vperm.slane %v163, 1
    %v167 = vperm.slane %v163, 2
    %v168 = vperm.slane %v163, 3
    %173 = vmatpush.msra.mxu0 %v159
    %174 = vmatpush.msra.mxu0 %v155
    %175 = vmatpush.msra.mxu0 %v151
    %176 = vmatpush.msra.mxu0 %v147
    %177 = vmatpush.msra.mxu0 %v143
    %178 = vmatpush.msra.mxu0 %v139
    %179 = vmatpush.msra.mxu0 %v135
    %180 = vmatpush.msra.mxu0 %v131
    %181 = vmatpush.msra.mxu0 %v127
    %182 = vmatpush.msra.mxu0 %v123
    %183 = vmatpush.msra.mxu0 %v119
    %184 = vmatpush.msra.mxu0 %v115
    %185 = vmatpush.msra.mxu0 %v111
    %186 = vmatpush.msra.mxu0 %v107
    %187 = vmatpush.msra.mxu0 %v103
    %188 = vmatpush.msra.mxu0 %v99
    %189 = vmatmul.f32.gmra.mxu0 %v98
    %v190 = vpop.f32.mrf.mxu0
    %v191 = vadd.f32 %v165, %v190
    %192 = vdwg.mxu0
    %193 = vmatpush.msra.mxu0 %v160
    %194 = vmatpush.msra.mxu0 %v156
    %195 = vmatpush.msra.mxu0 %v152
    %196 = vmatpush.msra.mxu0 %v148
    %197 = vmatpush.msra.mxu0 %v144
    %198 = vmatpush.msra.mxu0 %v140
    %199 = vmatpush.msra.mxu0 %v136
    %200 = vmatpush.msra.mxu0 %v132
    %201 = vmatpush.msra.mxu0 %v128
    %202 = vmatpush.msra.mxu0 %v124
    %203 = vmatpush.msra.mxu0 %v120
    %204 = vmatpush.msra.mxu0 %v116
    %205 = vmatpush.msra.mxu0 %v112
    %206 = vmatpush.msra.mxu0 %v108
    %207 = vmatpush.msra.mxu0 %v104
    %208 = vmatpush.msra.mxu0 %v100
    %209 = vmatmul.f32.gmra.mxu0 %v98
    %v210 = vpop.f32.mrf.mxu0
    %v211 = vadd.f32 %v166, %v210
    %212 = vdwg.mxu0
    %213 = vmatpush.msra.mxu0 %v161
    %214 = vmatpush.msra.mxu0 %v157
    %215 = vmatpush.msra.mxu0 %v153
    %216 = vmatpush.msra.mxu0 %v149
    %217 = vmatpush.msra.mxu0 %v145
    %218 = vmatpush.msra.mxu0 %v141
    %219 = vmatpush.msra.mxu0 %v137
    %220 = vmatpush.msra.mxu0 %v133
    %221 = vmatpush.msra.mxu0 %v129
    %222 = vmatpush.msra.mxu0 %v125
    %223 = vmatpush.msra.mxu0 %v121
    %224 = vmatpush.msra.mxu0 %v117
    %225 = vmatpush.msra.mxu0 %v113
    %226 = vmatpush.msra.mxu0 %v109
    %227 = vmatpush.msra.mxu0 %v105
    %228 = vmatpush.msra.mxu0 %v101
    %229 = vmatmul.f32.gmra.mxu0 %v98
    %v230 = vpop.f32.mrf.mxu0
    %v231 = vadd.f32 %v167, %v230
    %232 = vdwg.mxu0
    %233 = vmatpush.msra.mxu0 %v162
    %234 = vmatpush.msra.mxu0 %v158
    %235 = vmatpush.msra.mxu0 %v154
    %236 = vmatpush.msra.mxu0 %v150
    %237 = vmatpush.msra.mxu0 %v146
    %238 = vmatpush.msra.mxu0 %v142
    %239 = vmatpush.msra.mxu0 %v138
    %240 = vmatpush.msra.mxu0 %v134
    %241 = vmatpush.msra.mxu0 %v130
    %242 = vmatpush.msra.mxu0 %v126
    %243 = vmatpush.msra.mxu0 %v122
    %244 = vmatpush.msra.mxu0 %v118
    %245 = vmatpush.msra.mxu0 %v114
    %246 = vmatpush.msra.mxu0 %v110
    %247 = vmatpush.msra.mxu0 %v106
    %248 = vmatpush.msra.mxu0 %v102
    %249 = vmatmul.f32.gmra.mxu0 %v98
    %v250 = vpop.f32.mrf.mxu0
    %v251 = vadd.f32 %v168, %v250
    %252 = vdwg.mxu0
    %253 = vst [vmem:[#allocation2] sm:$0xff] %v191
    %254 = vst [vmem:[#allocation2 + $0x8] sm:$0xff] %v211
    %255 = vst [vmem:[#allocation2 + $0x10] sm:$0xff] %v231
    %256 = vst [vmem:[#allocation2 + $0x18] sm:$0xff] %v251
    %v257 = vld [vmem:[#allocation2] ss:$8 sm:$0xf]
    %v258 = vxor.u32 %v257, 2147483648
    %v259 = vmul.f32 %v258, 1.442695
    %v260 = vpow.pop %v259
    %v261 = vadd.f32 %v260, 1.0
    %v262 = vrcp.pop %v261
    %v263 = vmul.f32 %v261, %v262
    %v264 = vsub.f32 1.0, %v263
    %v265 = vmul.f32 %v262, %v264
    %v266 = vadd.f32 %v262, %v265
    %vm267 = vweird.f32 %v261
    %vm268 = vweird.f32 %v262
    %vm269 = vmor %vm267, %vm268
    %v270 = vsel %vm269, %v262, %v266
    %v271 = vand.u32 2147483647, %v261
    %vm272 = vcmp.eq.f32.partialorder %v271, 8.507059e+37
    %v273 = vand.u32 %v261, 2147483648
    %v274 = vor.u32 1.1754944e-38, %v273
    %v275 = vsel %vm272, %v274, %v270
    %v276 = vmul.f32 1.0, %v275
    %v277 = vtanh.pop %v257
    %v279 = vrot.slane %v277, 2
    %v281 = vmul.f32 %v276, %v279
    %v282 = vtanh.pop %v281
    %v284 = vrot.slane %v276, 3
    %v286 = vmul.f32 %v284, %v282
    %287 = vst [vmem:[#allocation3] sm:$0x1] %v286
    %s288 = scalar_lea.vmem [#allocation2], 1
    %v289 = vld [vmem:[%s288] ss:$8 sm:$0xf]
    %v290 = vld [vmem:[#allocation9] sm:$0xff]
    %v291 = vld [vmem:[#allocation9 + $0x8] sm:$0xff]
    %v292 = vld [vmem:[#allocation9 + $0x10] sm:$0xff]
    %v293 = vld [vmem:[#allocation9 + $0x18] sm:$0xff]
    %v294 = vld [vmem:[#allocation9 + $0x20] sm:$0xff]
    %v295 = vld [vmem:[#allocation9 + $0x28] sm:$0xff]
    %v296 = vld [vmem:[#allocation9 + $0x30] sm:$0xff]
    %v297 = vld [vmem:[#allocation9 + $0x38] sm:$0xff]
    %v298 = vld [vmem:[#allocation9 + $0x40] sm:$0xff]
    %v299 = vld [vmem:[#allocation9 + $0x48] sm:$0xff]
    %v300 = vld [vmem:[#allocation9 + $0x50] sm:$0xff]
    %v301 = vld [vmem:[#allocation9 + $0x58] sm:$0xff]
    %v302 = vld [vmem:[#allocation9 + $0x60] sm:$0xff]
    %v303 = vld [vmem:[#allocation9 + $0x68] sm:$0xff]
    %v304 = vld [vmem:[#allocation9 + $0x70] sm:$0xff]
    %v305 = vld [vmem:[#allocation9 + $0x78] sm:$0xff]
    %v306 = vld [vmem:[#allocation9 + $0x80] sm:$0xff]
    %v307 = vld [vmem:[#allocation9 + $0x88] sm:$0xff]
    %v308 = vld [vmem:[#allocation9 + $0x90] sm:$0xff]
    %v309 = vld [vmem:[#allocation9 + $0x98] sm:$0xff]
    %v310 = vld [vmem:[#allocation9 + $0xa0] sm:$0xff]
    %v311 = vld [vmem:[#allocation9 + $0xa8] sm:$0xff]
    %v312 = vld [vmem:[#allocation9 + $0xb0] sm:$0xff]
    %v313 = vld [vmem:[#allocation9 + $0xb8] sm:$0xff]
    %v314 = vld [vmem:[#allocation9 + $0xc0] sm:$0xff]
    %v315 = vld [vmem:[#allocation9 + $0xc8] sm:$0xff]
    %v316 = vld [vmem:[#allocation9 + $0xd0] sm:$0xff]
    %v317 = vld [vmem:[#allocation9 + $0xd8] sm:$0xff]
    %v318 = vld [vmem:[#allocation9 + $0xe0] sm:$0xff]
    %v319 = vld [vmem:[#allocation9 + $0xe8] sm:$0xff]
    %v320 = vld [vmem:[#allocation9 + $0xf0] sm:$0xff]
    %v321 = vld [vmem:[#allocation9 + $0xf8] sm:$0xff]
    %v322 = vld [vmem:[#allocation9 + $0x100] sm:$0xff]
    %v323 = vld [vmem:[#allocation9 + $0x108] sm:$0xff]
    %v324 = vld [vmem:[#allocation9 + $0x110] sm:$0xff]
    %v325 = vld [vmem:[#allocation9 + $0x118] sm:$0xff]
    %v326 = vld [vmem:[#allocation9 + $0x120] sm:$0xff]
    %v327 = vld [vmem:[#allocation9 + $0x128] sm:$0xff]
    %v328 = vld [vmem:[#allocation9 + $0x130] sm:$0xff]
    %v329 = vld [vmem:[#allocation9 + $0x138] sm:$0xff]
    %v330 = vld [vmem:[#allocation9 + $0x140] sm:$0xff]
    %v331 = vld [vmem:[#allocation9 + $0x148] sm:$0xff]
    %v332 = vld [vmem:[#allocation9 + $0x150] sm:$0xff]
    %v333 = vld [vmem:[#allocation9 + $0x158] sm:$0xff]
    %v334 = vld [vmem:[#allocation9 + $0x160] sm:$0xff]
    %v335 = vld [vmem:[#allocation9 + $0x168] sm:$0xff]
    %v336 = vld [vmem:[#allocation9 + $0x170] sm:$0xff]
    %v337 = vld [vmem:[#allocation9 + $0x178] sm:$0xff]
    %v338 = vld [vmem:[#allocation9 + $0x180] sm:$0xff]
    %v339 = vld [vmem:[#allocation9 + $0x188] sm:$0xff]
    %v340 = vld [vmem:[#allocation9 + $0x190] sm:$0xff]
    %v341 = vld [vmem:[#allocation9 + $0x198] sm:$0xff]
    %v342 = vld [vmem:[#allocation9 + $0x1a0] sm:$0xff]
    %v343 = vld [vmem:[#allocation9 + $0x1a8] sm:$0xff]
    %v344 = vld [vmem:[#allocation9 + $0x1b0] sm:$0xff]
    %v345 = vld [vmem:[#allocation9 + $0x1b8] sm:$0xff]
    %v346 = vld [vmem:[#allocation9 + $0x1c0] sm:$0xff]
    %v347 = vld [vmem:[#allocation9 + $0x1c8] sm:$0xff]
    %v348 = vld [vmem:[#allocation9 + $0x1d0] sm:$0xff]
    %v349 = vld [vmem:[#allocation9 + $0x1d8] sm:$0xff]
    %v350 = vld [vmem:[#allocation9 + $0x1e0] sm:$0xff]
    %v351 = vld [vmem:[#allocation9 + $0x1e8] sm:$0xff]
    %v352 = vld [vmem:[#allocation9 + $0x1f0] sm:$0xff]
    %v353 = vld [vmem:[#allocation9 + $0x1f8] sm:$0xff]
    %354 = vmatpush.msra.mxu0 %v350
    %355 = vmatpush.msra.mxu0 %v346
    %356 = vmatpush.msra.mxu0 %v342
    %357 = vmatpush.msra.mxu0 %v338
    %358 = vmatpush.msra.mxu0 %v334
    %359 = vmatpush.msra.mxu0 %v330
    %360 = vmatpush.msra.mxu0 %v326
    %361 = vmatpush.msra.mxu0 %v322
    %362 = vmatpush.msra.mxu0 %v318
    %363 = vmatpush.msra.mxu0 %v314
    %364 = vmatpush.msra.mxu0 %v310
    %365 = vmatpush.msra.mxu0 %v306
    %366 = vmatpush.msra.mxu0 %v302
    %367 = vmatpush.msra.mxu0 %v298
    %368 = vmatpush.msra.mxu0 %v294
    %369 = vmatpush.msra.mxu0 %v290
    %370 = vmatmul.f32.gmra.mxu0 %v286
    %v371 = vpop.f32.mrf.mxu0
    %v372 = vadd.f32 0.0, %v371
    %373 = vdwg.mxu0
    %374 = vmatpush.msra.mxu0 %v351
    %375 = vmatpush.msra.mxu0 %v347
    %376 = vmatpush.msra.mxu0 %v343
    %377 = vmatpush.msra.mxu0 %v339
    %378 = vmatpush.msra.mxu0 %v335
    %379 = vmatpush.msra.mxu0 %v331
    %380 = vmatpush.msra.mxu0 %v327
    %381 = vmatpush.msra.mxu0 %v323
    %382 = vmatpush.msra.mxu0 %v319
    %383 = vmatpush.msra.mxu0 %v315
    %384 = vmatpush.msra.mxu0 %v311
    %385 = vmatpush.msra.mxu0 %v307
    %386 = vmatpush.msra.mxu0 %v303
    %387 = vmatpush.msra.mxu0 %v299
    %388 = vmatpush.msra.mxu0 %v295
    %389 = vmatpush.msra.mxu0 %v291
    %390 = vmatmul.f32.gmra.mxu0 %v286
    %v391 = vpop.f32.mrf.mxu0
    %v392 = vadd.f32 0.0, %v391
    %393 = vdwg.mxu0
    %394 = vmatpush.msra.mxu0 %v352
    %395 = vmatpush.msra.mxu0 %v348
    %396 = vmatpush.msra.mxu0 %v344
    %397 = vmatpush.msra.mxu0 %v340
    %398 = vmatpush.msra.mxu0 %v336
    %399 = vmatpush.msra.mxu0 %v332
    %400 = vmatpush.msra.mxu0 %v328
    %401 = vmatpush.msra.mxu0 %v324
    %402 = vmatpush.msra.mxu0 %v320
    %403 = vmatpush.msra.mxu0 %v316
    %404 = vmatpush.msra.mxu0 %v312
    %405 = vmatpush.msra.mxu0 %v308
    %406 = vmatpush.msra.mxu0 %v304
    %407 = vmatpush.msra.mxu0 %v300
    %408 = vmatpush.msra.mxu0 %v296
    %409 = vmatpush.msra.mxu0 %v292
    %410 = vmatmul.f32.gmra.mxu0 %v286
    %v411 = vpop.f32.mrf.mxu0
    %v412 = vadd.f32 0.0, %v411
    %413 = vdwg.mxu0
    %414 = vmatpush.msra.mxu0 %v353
    %415 = vmatpush.msra.mxu0 %v349
    %416 = vmatpush.msra.mxu0 %v345
    %417 = vmatpush.msra.mxu0 %v341
    %418 = vmatpush.msra.mxu0 %v337
    %419 = vmatpush.msra.mxu0 %v333
    %420 = vmatpush.msra.mxu0 %v329
    %421 = vmatpush.msra.mxu0 %v325
    %422 = vmatpush.msra.mxu0 %v321
    %423 = vmatpush.msra.mxu0 %v317
    %424 = vmatpush.msra.mxu0 %v313
    %425 = vmatpush.msra.mxu0 %v309
    %426 = vmatpush.msra.mxu0 %v305
    %427 = vmatpush.msra.mxu0 %v301
    %428 = vmatpush.msra.mxu0 %v297
    %429 = vmatpush.msra.mxu0 %v293
    %430 = vmatmul.f32.gmra.mxu0 %v286
    %v431 = vpop.f32.mrf.mxu0
    %v432 = vadd.f32 0.0, %v431
    %433 = vdwg.mxu0
    %v438 = vrot.slane %v392, 7
    %v439 = vrot.slane %v412, 6
    %v440 = vrot.slane %v432, 5
    %vm441 = vcmask 1040384
    %v442 = vsel %vm441, %v372, %v438
    %vm443 = vcmask 1042434
    %v444 = vsel %vm443, %v439, %v440
    %vm445 = vcmask 1041408
    %v446 = vsel %vm445, %v442, %v444
    %v448 = vadd.f32 %v289, %v446
    %v449 = vxor.u32 %v448, 2147483648
    %v450 = vmul.f32 %v449, 1.442695
    %v451 = vpow.pop %v450
    %v452 = vadd.f32 %v451, 1.0
    %v453 = vrcp.pop %v452
    %v454 = vmul.f32 %v452, %v453
    %v455 = vsub.f32 1.0, %v454
    %v456 = vmul.f32 %v453, %v455
    %v457 = vadd.f32 %v453, %v456
    %vm458 = vweird.f32 %v452
    %vm459 = vweird.f32 %v453
    %vm460 = vmor %vm458, %vm459
    %v461 = vsel %vm460, %v453, %v457
    %v462 = vand.u32 2147483647, %v452
    %vm463 = vcmp.eq.f32.partialorder %v462, 8.507059e+37
    %v464 = vand.u32 %v452, 2147483648
    %v465 = vor.u32 1.1754944e-38, %v464
    %v466 = vsel %vm463, %v465, %v461
    %v467 = vmul.f32 1.0, %v466
    %v468 = vtanh.pop %v448
    %v470 = vrot.slane %v467, 1
    %v472 = vmul.f32 %v470, %v281
    %v474 = vrot.slane %v468, 2
    %v476 = vmul.f32 %v467, %v474
    %v477 = vadd.f32 %v472, %v476
    %v478 = vtanh.pop %v477
    %v479 = vrot.slane %v467, 3
    %v481 = vmul.f32 %v479, %v478
    %482 = vst [vmem:[#allocation3 + $0x1] sm:$0x1] %v481
    %s483 = scalar_lea.vmem [#allocation2], 2
    %v484 = vld [vmem:[%s483] ss:$8 sm:$0xf]
    %v485 = vld [vmem:[#allocation9] sm:$0xff]
    %v486 = vld [vmem:[#allocation9 + $0x8] sm:$0xff]
    %v487 = vld [vmem:[#allocation9 + $0x10] sm:$0xff]
    %v488 = vld [vmem:[#allocation9 + $0x18] sm:$0xff]
    %v489 = vld [vmem:[#allocation9 + $0x20] sm:$0xff]
    %v490 = vld [vmem:[#allocation9 + $0x28] sm:$0xff]
    %v491 = vld [vmem:[#allocation9 + $0x30] sm:$0xff]
    %v492 = vld [vmem:[#allocation9 + $0x38] sm:$0xff]
    %v493 = vld [vmem:[#allocation9 + $0x40] sm:$0xff]
    %v494 = vld [vmem:[#allocation9 + $0x48] sm:$0xff]
    %v495 = vld [vmem:[#allocation9 + $0x50] sm:$0xff]
    %v496 = vld [vmem:[#allocation9 + $0x58] sm:$0xff]
    %v497 = vld [vmem:[#allocation9 + $0x60] sm:$0xff]
    %v498 = vld [vmem:[#allocation9 + $0x68] sm:$0xff]
    %v499 = vld [vmem:[#allocation9 + $0x70] sm:$0xff]
    %v500 = vld [vmem:[#allocation9 + $0x78] sm:$0xff]
    %v501 = vld [vmem:[#allocation9 + $0x80] sm:$0xff]
    %v502 = vld [vmem:[#allocation9 + $0x88] sm:$0xff]
    %v503 = vld [vmem:[#allocation9 + $0x90] sm:$0xff]
    %v504 = vld [vmem:[#allocation9 + $0x98] sm:$0xff]
    %v505 = vld [vmem:[#allocation9 + $0xa0] sm:$0xff]
    %v506 = vld [vmem:[#allocation9 + $0xa8] sm:$0xff]
    %v507 = vld [vmem:[#allocation9 + $0xb0] sm:$0xff]
    %v508 = vld [vmem:[#allocation9 + $0xb8] sm:$0xff]
    %v509 = vld [vmem:[#allocation9 + $0xc0] sm:$0xff]
    %v510 = vld [vmem:[#allocation9 + $0xc8] sm:$0xff]
    %v511 = vld [vmem:[#allocation9 + $0xd0] sm:$0xff]
    %v512 = vld [vmem:[#allocation9 + $0xd8] sm:$0xff]
    %v513 = vld [vmem:[#allocation9 + $0xe0] sm:$0xff]
    %v514 = vld [vmem:[#allocation9 + $0xe8] sm:$0xff]
    %v515 = vld [vmem:[#allocation9 + $0xf0] sm:$0xff]
    %v516 = vld [vmem:[#allocation9 + $0xf8] sm:$0xff]
    %v517 = vld [vmem:[#allocation9 + $0x100] sm:$0xff]
    %v518 = vld [vmem:[#allocation9 + $0x108] sm:$0xff]
    %v519 = vld [vmem:[#allocation9 + $0x110] sm:$0xff]
    %v520 = vld [vmem:[#allocation9 + $0x118] sm:$0xff]
    %v521 = vld [vmem:[#allocation9 + $0x120] sm:$0xff]
    %v522 = vld [vmem:[#allocation9 + $0x128] sm:$0xff]
    %v523 = vld [vmem:[#allocation9 + $0x130] sm:$0xff]
    %v524 = vld [vmem:[#allocation9 + $0x138] sm:$0xff]
    %v525 = vld [vmem:[#allocation9 + $0x140] sm:$0xff]
    %v526 = vld [vmem:[#allocation9 + $0x148] sm:$0xff]
    %v527 = vld [vmem:[#allocation9 + $0x150] sm:$0xff]
    %v528 = vld [vmem:[#allocation9 + $0x158] sm:$0xff]
    %v529 = vld [vmem:[#allocation9 + $0x160] sm:$0xff]
    %v530 = vld [vmem:[#allocation9 + $0x168] sm:$0xff]
    %v531 = vld [vmem:[#allocation9 + $0x170] sm:$0xff]
    %v532 = vld [vmem:[#allocation9 + $0x178] sm:$0xff]
    %v533 = vld [vmem:[#allocation9 + $0x180] sm:$0xff]
    %v534 = vld [vmem:[#allocation9 + $0x188] sm:$0xff]
    %v535 = vld [vmem:[#allocation9 + $0x190] sm:$0xff]
    %v536 = vld [vmem:[#allocation9 + $0x198] sm:$0xff]
    %v537 = vld [vmem:[#allocation9 + $0x1a0] sm:$0xff]
    %v538 = vld [vmem:[#allocation9 + $0x1a8] sm:$0xff]
    %v539 = vld [vmem:[#allocation9 + $0x1b0] sm:$0xff]
    %v540 = vld [vmem:[#allocation9 + $0x1b8] sm:$0xff]
    %v541 = vld [vmem:[#allocation9 + $0x1c0] sm:$0xff]
    %v542 = vld [vmem:[#allocation9 + $0x1c8] sm:$0xff]
    %v543 = vld [vmem:[#allocation9 + $0x1d0] sm:$0xff]
    %v544 = vld [vmem:[#allocation9 + $0x1d8] sm:$0xff]
    %v545 = vld [vmem:[#allocation9 + $0x1e0] sm:$0xff]
    %v546 = vld [vmem:[#allocation9 + $0x1e8] sm:$0xff]
    %v547 = vld [vmem:[#allocation9 + $0x1f0] sm:$0xff]
    %v548 = vld [vmem:[#allocation9 + $0x1f8] sm:$0xff]
    %549 = vmatpush.msra.mxu0 %v545
    %550 = vmatpush.msra.mxu0 %v541
    %551 = vmatpush.msra.mxu0 %v537
    %552 = vmatpush.msra.mxu0 %v533
    %553 = vmatpush.msra.mxu0 %v529
    %554 = vmatpush.msra.mxu0 %v525
    %555 = vmatpush.msra.mxu0 %v521
    %556 = vmatpush.msra.mxu0 %v517
    %557 = vmatpush.msra.mxu0 %v513
    %558 = vmatpush.msra.mxu0 %v509
    %559 = vmatpush.msra.mxu0 %v505
    %560 = vmatpush.msra.mxu0 %v501
    %561 = vmatpush.msra.mxu0 %v497
    %562 = vmatpush.msra.mxu0 %v493
    %563 = vmatpush.msra.mxu0 %v489
    %564 = vmatpush.msra.mxu0 %v485
    %565 = vmatmul.f32.gmra.mxu0 %v481
    %v566 = vpop.f32.mrf.mxu0
    %v567 = vadd.f32 0.0, %v566
    %568 = vdwg.mxu0
    %569 = vmatpush.msra.mxu0 %v546
    %570 = vmatpush.msra.mxu0 %v542
    %571 = vmatpush.msra.mxu0 %v538
    %572 = vmatpush.msra.mxu0 %v534
    %573 = vmatpush.msra.mxu0 %v530
    %574 = vmatpush.msra.mxu0 %v526
    %575 = vmatpush.msra.mxu0 %v522
    %576 = vmatpush.msra.mxu0 %v518
    %577 = vmatpush.msra.mxu0 %v514
    %578 = vmatpush.msra.mxu0 %v510
    %579 = vmatpush.msra.mxu0 %v506
    %580 = vmatpush.msra.mxu0 %v502
    %581 = vmatpush.msra.mxu0 %v498
    %582 = vmatpush.msra.mxu0 %v494
    %583 = vmatpush.msra.mxu0 %v490
    %584 = vmatpush.msra.mxu0 %v486
    %585 = vmatmul.f32.gmra.mxu0 %v481
    %v586 = vpop.f32.mrf.mxu0
    %v587 = vadd.f32 0.0, %v586
    %588 = vdwg.mxu0
    %589 = vmatpush.msra.mxu0 %v547
    %590 = vmatpush.msra.mxu0 %v543
    %591 = vmatpush.msra.mxu0 %v539
    %592 = vmatpush.msra.mxu0 %v535
    %593 = vmatpush.msra.mxu0 %v531
    %594 = vmatpush.msra.mxu0 %v527
    %595 = vmatpush.msra.mxu0 %v523
    %596 = vmatpush.msra.mxu0 %v519
    %597 = vmatpush.msra.mxu0 %v515
    %598 = vmatpush.msra.mxu0 %v511
    %599 = vmatpush.msra.mxu0 %v507
    %600 = vmatpush.msra.mxu0 %v503
    %601 = vmatpush.msra.mxu0 %v499
    %602 = vmatpush.msra.mxu0 %v495
    %603 = vmatpush.msra.mxu0 %v491
    %604 = vmatpush.msra.mxu0 %v487
    %605 = vmatmul.f32.gmra.mxu0 %v481
    %v606 = vpop.f32.mrf.mxu0
    %v607 = vadd.f32 0.0, %v606
    %608 = vdwg.mxu0
    %609 = vmatpush.msra.mxu0 %v548
    %610 = vmatpush.msra.mxu0 %v544
    %611 = vmatpush.msra.mxu0 %v540
    %612 = vmatpush.msra.mxu0 %v536
    %613 = vmatpush.msra.mxu0 %v532
    %614 = vmatpush.msra.mxu0 %v528
    %615 = vmatpush.msra.mxu0 %v524
    %616 = vmatpush.msra.mxu0 %v520
    %617 = vmatpush.msra.mxu0 %v516
    %618 = vmatpush.msra.mxu0 %v512
    %619 = vmatpush.msra.mxu0 %v508
    %620 = vmatpush.msra.mxu0 %v504
    %621 = vmatpush.msra.mxu0 %v500
    %622 = vmatpush.msra.mxu0 %v496
    %623 = vmatpush.msra.mxu0 %v492
    %624 = vmatpush.msra.mxu0 %v488
    %625 = vmatmul.f32.gmra.mxu0 %v481
    %v626 = vpop.f32.mrf.mxu0
    %v627 = vadd.f32 0.0, %v626
    %628 = vdwg.mxu0
    %v633 = vrot.slane %v587, 7
    %v634 = vrot.slane %v607, 6
    %v635 = vrot.slane %v627, 5
    %v636 = vsel %vm441, %v567, %v633
    %v637 = vsel %vm443, %v634, %v635
    %v638 = vsel %vm445, %v636, %v637
    %v640 = vadd.f32 %v484, %v638
    %v641 = vxor.u32 %v640, 2147483648
    %v642 = vmul.f32 %v641, 1.442695
    %v643 = vpow.pop %v642
    %v644 = vadd.f32 %v643, 1.0
    %v645 = vrcp.pop %v644
    %v646 = vmul.f32 %v644, %v645
    %v647 = vsub.f32 1.0, %v646
    %v648 = vmul.f32 %v645, %v647
    %v649 = vadd.f32 %v645, %v648
    %vm650 = vweird.f32 %v644
    %vm651 = vweird.f32 %v645
    %vm652 = vmor %vm650, %vm651
    %v653 = vsel %vm652, %v645, %v649
    %v654 = vand.u32 2147483647, %v644
    %vm655 = vcmp.eq.f32.partialorder %v654, 8.507059e+37
    %v656 = vand.u32 %v644, 2147483648
    %v657 = vor.u32 1.1754944e-38, %v656
    %v658 = vsel %vm655, %v657, %v653
    %v659 = vmul.f32 1.0, %v658
    %v660 = vtanh.pop %v640
    %v662 = vrot.slane %v659, 1
    %v664 = vmul.f32 %v662, %v477
    %v666 = vrot.slane %v660, 2
    %v668 = vmul.f32 %v659, %v666
    %v669 = vadd.f32 %v664, %v668
    %v670 = vtanh.pop %v669
    %v671 = vrot.slane %v659, 3
    %v673 = vmul.f32 %v671, %v670
    %674 = vst [vmem:[#allocation3 + $0x2] sm:$0x1] %v673
    %s675 = scalar_lea.vmem [#allocation2], 3
    %v676 = vld [vmem:[%s675] ss:$8 sm:$0xf]
    %v677 = vld [vmem:[#allocation9] sm:$0xff]
    %v678 = vld [vmem:[#allocation9 + $0x8] sm:$0xff]
    %v679 = vld [vmem:[#allocation9 + $0x10] sm:$0xff]
    %v680 = vld [vmem:[#allocation9 + $0x18] sm:$0xff]
    %v681 = vld [vmem:[#allocation9 + $0x20] sm:$0xff]
    %v682 = vld [vmem:[#allocation9 + $0x28] sm:$0xff]
    %v683 = vld [vmem:[#allocation9 + $0x30] sm:$0xff]
    %v684 = vld [vmem:[#allocation9 + $0x38] sm:$0xff]
    %v685 = vld [vmem:[#allocation9 + $0x40] sm:$0xff]
    %v686 = vld [vmem:[#allocation9 + $0x48] sm:$0xff]
    %v687 = vld [vmem:[#allocation9 + $0x50] sm:$0xff]
    %v688 = vld [vmem:[#allocation9 + $0x58] sm:$0xff]
    %v689 = vld [vmem:[#allocation9 + $0x60] sm:$0xff]
    %v690 = vld [vmem:[#allocation9 + $0x68] sm:$0xff]
    %v691 = vld [vmem:[#allocation9 + $0x70] sm:$0xff]
    %v692 = vld [vmem:[#allocation9 + $0x78] sm:$0xff]
    %v693 = vld [vmem:[#allocation9 + $0x80] sm:$0xff]
    %v694 = vld [vmem:[#allocation9 + $0x88] sm:$0xff]
    %v695 = vld [vmem:[#allocation9 + $0x90] sm:$0xff]
    %v696 = vld [vmem:[#allocation9 + $0x98] sm:$0xff]
    %v697 = vld [vmem:[#allocation9 + $0xa0] sm:$0xff]
    %v698 = vld [vmem:[#allocation9 + $0xa8] sm:$0xff]
    %v699 = vld [vmem:[#allocation9 + $0xb0] sm:$0xff]
    %v700 = vld [vmem:[#allocation9 + $0xb8] sm:$0xff]
    %v701 = vld [vmem:[#allocation9 + $0xc0] sm:$0xff]
    %v702 = vld [vmem:[#allocation9 + $0xc8] sm:$0xff]
    %v703 = vld [vmem:[#allocation9 + $0xd0] sm:$0xff]
    %v704 = vld [vmem:[#allocation9 + $0xd8] sm:$0xff]
    %v705 = vld [vmem:[#allocation9 + $0xe0] sm:$0xff]
    %v706 = vld [vmem:[#allocation9 + $0xe8] sm:$0xff]
    %v707 = vld [vmem:[#allocation9 + $0xf0] sm:$0xff]
    %v708 = vld [vmem:[#allocation9 + $0xf8] sm:$0xff]
    %v709 = vld [vmem:[#allocation9 + $0x100] sm:$0xff]
    %v710 = vld [vmem:[#allocation9 + $0x108] sm:$0xff]
    %v711 = vld [vmem:[#allocation9 + $0x110] sm:$0xff]
    %v712 = vld [vmem:[#allocation9 + $0x118] sm:$0xff]
    %v713 = vld [vmem:[#allocation9 + $0x120] sm:$0xff]
    %v714 = vld [vmem:[#allocation9 + $0x128] sm:$0xff]
    %v715 = vld [vmem:[#allocation9 + $0x130] sm:$0xff]
    %v716 = vld [vmem:[#allocation9 + $0x138] sm:$0xff]
    %v717 = vld [vmem:[#allocation9 + $0x140] sm:$0xff]
    %v718 = vld [vmem:[#allocation9 + $0x148] sm:$0xff]
    %v719 = vld [vmem:[#allocation9 + $0x150] sm:$0xff]
    %v720 = vld [vmem:[#allocation9 + $0x158] sm:$0xff]
    %v721 = vld [vmem:[#allocation9 + $0x160] sm:$0xff]
    %v722 = vld [vmem:[#allocation9 + $0x168] sm:$0xff]
    %v723 = vld [vmem:[#allocation9 + $0x170] sm:$0xff]
    %v724 = vld [vmem:[#allocation9 + $0x178] sm:$0xff]
    %v725 = vld [vmem:[#allocation9 + $0x180] sm:$0xff]
    %v726 = vld [vmem:[#allocation9 + $0x188] sm:$0xff]
    %v727 = vld [vmem:[#allocation9 + $0x190] sm:$0xff]
    %v728 = vld [vmem:[#allocation9 + $0x198] sm:$0xff]
    %v729 = vld [vmem:[#allocation9 + $0x1a0] sm:$0xff]
    %v730 = vld [vmem:[#allocation9 + $0x1a8] sm:$0xff]
    %v731 = vld [vmem:[#allocation9 + $0x1b0] sm:$0xff]
    %v732 = vld [vmem:[#allocation9 + $0x1b8] sm:$0xff]
    %v733 = vld [vmem:[#allocation9 + $0x1c0] sm:$0xff]
    %v734 = vld [vmem:[#allocation9 + $0x1c8] sm:$0xff]
    %v735 = vld [vmem:[#allocation9 + $0x1d0] sm:$0xff]
    %v736 = vld [vmem:[#allocation9 + $0x1d8] sm:$0xff]
    %v737 = vld [vmem:[#allocation9 + $0x1e0] sm:$0xff]
    %v738 = vld [vmem:[#allocation9 + $0x1e8] sm:$0xff]
    %v739 = vld [vmem:[#allocation9 + $0x1f0] sm:$0xff]
    %v740 = vld [vmem:[#allocation9 + $0x1f8] sm:$0xff]
    %741 = vmatpush.msra.mxu0 %v737
    %742 = vmatpush.msra.mxu0 %v733
    %743 = vmatpush.msra.mxu0 %v729
    %744 = vmatpush.msra.mxu0 %v725
    %745 = vmatpush.msra.mxu0 %v721
    %746 = vmatpush.msra.mxu0 %v717
    %747 = vmatpush.msra.mxu0 %v713
    %748 = vmatpush.msra.mxu0 %v709
    %749 = vmatpush.msra.mxu0 %v705
    %750 = vmatpush.msra.mxu0 %v701
    %751 = vmatpush.msra.mxu0 %v697
    %752 = vmatpush.msra.mxu0 %v693
    %753 = vmatpush.msra.mxu0 %v689
    %754 = vmatpush.msra.mxu0 %v685
    %755 = vmatpush.msra.mxu0 %v681
    %756 = vmatpush.msra.mxu0 %v677
    %757 = vmatmul.f32.gmra.mxu0 %v673
    %v758 = vpop.f32.mrf.mxu0
    %v759 = vadd.f32 0.0, %v758
    %760 = vdwg.mxu0
    %761 = vmatpush.msra.mxu0 %v738
    %762 = vmatpush.msra.mxu0 %v734
    %763 = vmatpush.msra.mxu0 %v730
    %764 = vmatpush.msra.mxu0 %v726
    %765 = vmatpush.msra.mxu0 %v722
    %766 = vmatpush.msra.mxu0 %v718
    %767 = vmatpush.msra.mxu0 %v714
    %768 = vmatpush.msra.mxu0 %v710
    %769 = vmatpush.msra.mxu0 %v706
    %770 = vmatpush.msra.mxu0 %v702
    %771 = vmatpush.msra.mxu0 %v698
    %772 = vmatpush.msra.mxu0 %v694
    %773 = vmatpush.msra.mxu0 %v690
    %774 = vmatpush.msra.mxu0 %v686
    %775 = vmatpush.msra.mxu0 %v682
    %776 = vmatpush.msra.mxu0 %v678
    %777 = vmatmul.f32.gmra.mxu0 %v673
    %v778 = vpop.f32.mrf.mxu0
    %v779 = vadd.f32 0.0, %v778
    %780 = vdwg.mxu0
    %781 = vmatpush.msra.mxu0 %v739
    %782 = vmatpush.msra.mxu0 %v735
    %783 = vmatpush.msra.mxu0 %v731
    %784 = vmatpush.msra.mxu0 %v727
    %785 = vmatpush.msra.mxu0 %v723
    %786 = vmatpush.msra.mxu0 %v719
    %787 = vmatpush.msra.mxu0 %v715
    %788 = vmatpush.msra.mxu0 %v711
    %789 = vmatpush.msra.mxu0 %v707
    %790 = vmatpush.msra.mxu0 %v703
    %791 = vmatpush.msra.mxu0 %v699
    %792 = vmatpush.msra.mxu0 %v695
    %793 = vmatpush.msra.mxu0 %v691
    %794 = vmatpush.msra.mxu0 %v687
    %795 = vmatpush.msra.mxu0 %v683
    %796 = vmatpush.msra.mxu0 %v679
    %797 = vmatmul.f32.gmra.mxu0 %v673
    %v798 = vpop.f32.mrf.mxu0
    %v799 = vadd.f32 0.0, %v798
    %800 = vdwg.mxu0
    %801 = vmatpush.msra.mxu0 %v740
    %802 = vmatpush.msra.mxu0 %v736
    %803 = vmatpush.msra.mxu0 %v732
    %804 = vmatpush.msra.mxu0 %v728
    %805 = vmatpush.msra.mxu0 %v724
    %806 = vmatpush.msra.mxu0 %v720
    %807 = vmatpush.msra.mxu0 %v716
    %808 = vmatpush.msra.mxu0 %v712
    %809 = vmatpush.msra.mxu0 %v708
    %810 = vmatpush.msra.mxu0 %v704
    %811 = vmatpush.msra.mxu0 %v700
    %812 = vmatpush.msra.mxu0 %v696
    %813 = vmatpush.msra.mxu0 %v692
    %814 = vmatpush.msra.mxu0 %v688
    %815 = vmatpush.msra.mxu0 %v684
    %816 = vmatpush.msra.mxu0 %v680
    %817 = vmatmul.f32.gmra.mxu0 %v673
    %v818 = vpop.f32.mrf.mxu0
    %v819 = vadd.f32 0.0, %v818
    %820 = vdwg.mxu0
    %v825 = vrot.slane %v779, 7
    %v826 = vrot.slane %v799, 6
    %v827 = vrot.slane %v819, 5
    %v828 = vsel %vm441, %v759, %v825
    %v829 = vsel %vm443, %v826, %v827
    %v830 = vsel %vm445, %v828, %v829
    %v832 = vadd.f32 %v676, %v830
    %v833 = vxor.u32 %v832, 2147483648
    %v834 = vmul.f32 %v833, 1.442695
    %v835 = vpow.pop %v834
    %v836 = vadd.f32 %v835, 1.0
    %v837 = vrcp.pop %v836
    %v838 = vmul.f32 %v836, %v837
    %v839 = vsub.f32 1.0, %v838
    %v840 = vmul.f32 %v837, %v839
    %v841 = vadd.f32 %v837, %v840
    %vm842 = vweird.f32 %v836
    %vm843 = vweird.f32 %v837
    %vm844 = vmor %vm842, %vm843
    %v845 = vsel %vm844, %v837, %v841
    %v846 = vand.u32 2147483647, %v836
    %vm847 = vcmp.eq.f32.partialorder %v846, 8.507059e+37
    %v848 = vand.u32 %v836, 2147483648
    %v849 = vor.u32 1.1754944e-38, %v848
    %v850 = vsel %vm847, %v849, %v845
    %v851 = vmul.f32 1.0, %v850
    %v852 = vtanh.pop %v832
    %v854 = vrot.slane %v851, 1
    %v856 = vmul.f32 %v854, %v669
    %v858 = vrot.slane %v852, 2
    %v860 = vmul.f32 %v851, %v858
    %v861 = vadd.f32 %v856, %v860
    %v862 = vtanh.pop %v861
    %v863 = vrot.slane %v851, 3
    %v865 = vmul.f32 %v863, %v862
    %866 = vst [vmem:[#allocation3 + $0x3] sm:$0x1] %v865
    %s867 = scalar_lea.vmem [#allocation2], 4
    %v868 = vld [vmem:[%s867] ss:$8 sm:$0xf]
    %v869 = vld [vmem:[#allocation9] sm:$0xff]
    %v870 = vld [vmem:[#allocation9 + $0x8] sm:$0xff]
    %v871 = vld [vmem:[#allocation9 + $0x10] sm:$0xff]
    %v872 = vld [vmem:[#allocation9 + $0x18] sm:$0xff]
    %v873 = vld [vmem:[#allocation9 + $0x20] sm:$0xff]
    %v874 = vld [vmem:[#allocation9 + $0x28] sm:$0xff]
    %v875 = vld [vmem:[#allocation9 + $0x30] sm:$0xff]
    %v876 = vld [vmem:[#allocation9 + $0x38] sm:$0xff]
    %v877 = vld [vmem:[#allocation9 + $0x40] sm:$0xff]
    %v878 = vld [vmem:[#allocation9 + $0x48] sm:$0xff]
    %v879 = vld [vmem:[#allocation9 + $0x50] sm:$0xff]
    %v880 = vld [vmem:[#allocation9 + $0x58] sm:$0xff]
    %v881 = vld [vmem:[#allocation9 + $0x60] sm:$0xff]
    %v882 = vld [vmem:[#allocation9 + $0x68] sm:$0xff]
    %v883 = vld [vmem:[#allocation9 + $0x70] sm:$0xff]
    %v884 = vld [vmem:[#allocation9 + $0x78] sm:$0xff]
    %v885 = vld [vmem:[#allocation9 + $0x80] sm:$0xff]
    %v886 = vld [vmem:[#allocation9 + $0x88] sm:$0xff]
    %v887 = vld [vmem:[#allocation9 + $0x90] sm:$0xff]
    %v888 = vld [vmem:[#allocation9 + $0x98] sm:$0xff]
    %v889 = vld [vmem:[#allocation9 + $0xa0] sm:$0xff]
    %v890 = vld [vmem:[#allocation9 + $0xa8] sm:$0xff]
    %v891 = vld [vmem:[#allocation9 + $0xb0] sm:$0xff]
    %v892 = vld [vmem:[#allocation9 + $0xb8] sm:$0xff]
    %v893 = vld [vmem:[#allocation9 + $0xc0] sm:$0xff]
    %v894 = vld [vmem:[#allocation9 + $0xc8] sm:$0xff]
    %v895 = vld [vmem:[#allocation9 + $0xd0] sm:$0xff]
    %v896 = vld [vmem:[#allocation9 + $0xd8] sm:$0xff]
    %v897 = vld [vmem:[#allocation9 + $0xe0] sm:$0xff]
    %v898 = vld [vmem:[#allocation9 + $0xe8] sm:$0xff]
    %v899 = vld [vmem:[#allocation9 + $0xf0] sm:$0xff]
    %v900 = vld [vmem:[#allocation9 + $0xf8] sm:$0xff]
    %v901 = vld [vmem:[#allocation9 + $0x100] sm:$0xff]
    %v902 = vld [vmem:[#allocation9 + $0x108] sm:$0xff]
    %v903 = vld [vmem:[#allocation9 + $0x110] sm:$0xff]
    %v904 = vld [vmem:[#allocation9 + $0x118] sm:$0xff]
    %v905 = vld [vmem:[#allocation9 + $0x120] sm:$0xff]
    %v906 = vld [vmem:[#allocation9 + $0x128] sm:$0xff]
    %v907 = vld [vmem:[#allocation9 + $0x130] sm:$0xff]
    %v908 = vld [vmem:[#allocation9 + $0x138] sm:$0xff]
    %v909 = vld [vmem:[#allocation9 + $0x140] sm:$0xff]
    %v910 = vld [vmem:[#allocation9 + $0x148] sm:$0xff]
    %v911 = vld [vmem:[#allocation9 + $0x150] sm:$0xff]
    %v912 = vld [vmem:[#allocation9 + $0x158] sm:$0xff]
    %v913 = vld [vmem:[#allocation9 + $0x160] sm:$0xff]
    %v914 = vld [vmem:[#allocation9 + $0x168] sm:$0xff]
    %v915 = vld [vmem:[#allocation9 + $0x170] sm:$0xff]
    %v916 = vld [vmem:[#allocation9 + $0x178] sm:$0xff]
    %v917 = vld [vmem:[#allocation9 + $0x180] sm:$0xff]
    %v918 = vld [vmem:[#allocation9 + $0x188] sm:$0xff]
    %v919 = vld [vmem:[#allocation9 + $0x190] sm:$0xff]
    %v920 = vld [vmem:[#allocation9 + $0x198] sm:$0xff]
    %v921 = vld [vmem:[#allocation9 + $0x1a0] sm:$0xff]
    %v922 = vld [vmem:[#allocation9 + $0x1a8] sm:$0xff]
    %v923 = vld [vmem:[#allocation9 + $0x1b0] sm:$0xff]
    %v924 = vld [vmem:[#allocation9 + $0x1b8] sm:$0xff]
    %v925 = vld [vmem:[#allocation9 + $0x1c0] sm:$0xff]
    %v926 = vld [vmem:[#allocation9 + $0x1c8] sm:$0xff]
    %v927 = vld [vmem:[#allocation9 + $0x1d0] sm:$0xff]
    %v928 = vld [vmem:[#allocation9 + $0x1d8] sm:$0xff]
    %v929 = vld [vmem:[#allocation9 + $0x1e0] sm:$0xff]
    %v930 = vld [vmem:[#allocation9 + $0x1e8] sm:$0xff]
    %v931 = vld [vmem:[#allocation9 + $0x1f0] sm:$0xff]
    %v932 = vld [vmem:[#allocation9 + $0x1f8] sm:$0xff]
    %933 = vmatpush.msra.mxu0 %v929
    %934 = vmatpush.msra.mxu0 %v925
    %935 = vmatpush.msra.mxu0 %v921
    %936 = vmatpush.msra.mxu0 %v917
    %937 = vmatpush.msra.mxu0 %v913
    %938 = vmatpush.msra.mxu0 %v909
    %939 = vmatpush.msra.mxu0 %v905
    %940 = vmatpush.msra.mxu0 %v901
    %941 = vmatpush.msra.mxu0 %v897
    %942 = vmatpush.msra.mxu0 %v893
    %943 = vmatpush.msra.mxu0 %v889
    %944 = vmatpush.msra.mxu0 %v885
    %945 = vmatpush.msra.mxu0 %v881
    %946 = vmatpush.msra.mxu0 %v877
    %947 = vmatpush.msra.mxu0 %v873
    %948 = vmatpush.msra.mxu0 %v869
    %949 = vmatmul.f32.gmra.mxu0 %v865
    %v950 = vpop.f32.mrf.mxu0
    %v951 = vadd.f32 0.0, %v950
    %952 = vdwg.mxu0
    %953 = vmatpush.msra.mxu0 %v930
    %954 = vmatpush.msra.mxu0 %v926
    %955 = vmatpush.msra.mxu0 %v922
    %956 = vmatpush.msra.mxu0 %v918
    %957 = vmatpush.msra.mxu0 %v914
    %958 = vmatpush.msra.mxu0 %v910
    %959 = vmatpush.msra.mxu0 %v906
    %960 = vmatpush.msra.mxu0 %v902
    %961 = vmatpush.msra.mxu0 %v898
    %962 = vmatpush.msra.mxu0 %v894
    %963 = vmatpush.msra.mxu0 %v890
    %964 = vmatpush.msra.mxu0 %v886
    %965 = vmatpush.msra.mxu0 %v882
    %966 = vmatpush.msra.mxu0 %v878
    %967 = vmatpush.msra.mxu0 %v874
    %968 = vmatpush.msra.mxu0 %v870
    %969 = vmatmul.f32.gmra.mxu0 %v865
    %v970 = vpop.f32.mrf.mxu0
    %v971 = vadd.f32 0.0, %v970
    %972 = vdwg.mxu0
    %973 = vmatpush.msra.mxu0 %v931
    %974 = vmatpush.msra.mxu0 %v927
    %975 = vmatpush.msra.mxu0 %v923
    %976 = vmatpush.msra.mxu0 %v919
    %977 = vmatpush.msra.mxu0 %v915
    %978 = vmatpush.msra.mxu0 %v911
    %979 = vmatpush.msra.mxu0 %v907
    %980 = vmatpush.msra.mxu0 %v903
    %981 = vmatpush.msra.mxu0 %v899
    %982 = vmatpush.msra.mxu0 %v895
    %983 = vmatpush.msra.mxu0 %v891
    %984 = vmatpush.msra.mxu0 %v887
    %985 = vmatpush.msra.mxu0 %v883
    %986 = vmatpush.msra.mxu0 %v879
    %987 = vmatpush.msra.mxu0 %v875
    %988 = vmatpush.msra.mxu0 %v871
    %989 = vmatmul.f32.gmra.mxu0 %v865
    %v990 = vpop.f32.mrf.mxu0
    %v991 = vadd.f32 0.0, %v990
    %992 = vdwg.mxu0
    %993 = vmatpush.msra.mxu0 %v932
    %994 = vmatpush.msra.mxu0 %v928
    %995 = vmatpush.msra.mxu0 %v924
    %996 = vmatpush.msra.mxu0 %v920
    %997 = vmatpush.msra.mxu0 %v916
    %998 = vmatpush.msra.mxu0 %v912
    %999 = vmatpush.msra.mxu0 %v908
    %1000 = vmatpush.msra.mxu0 %v904
    %1001 = vmatpush.msra.mxu0 %v900
    %1002 = vmatpush.msra.mxu0 %v896
    %1003 = vmatpush.msra.mxu0 %v892
    %1004 = vmatpush.msra.mxu0 %v888
    %1005 = vmatpush.msra.mxu0 %v884
    %1006 = vmatpush.msra.mxu0 %v880
    %1007 = vmatpush.msra.mxu0 %v876
    %1008 = vmatpush.msra.mxu0 %v872
    %1009 = vmatmul.f32.gmra.mxu0 %v865
    %v1010 = vpop.f32.mrf.mxu0
    %v1011 = vadd.f32 0.0, %v1010
    %1012 = vdwg.mxu0
    %v1017 = vrot.slane %v971, 7
    %v1018 = vrot.slane %v991, 6
    %v1019 = vrot.slane %v1011, 5
    %v1020 = vsel %vm441, %v951, %v1017
    %v1021 = vsel %vm443, %v1018, %v1019
    %v1022 = vsel %vm445, %v1020, %v1021
    %v1024 = vadd.f32 %v868, %v1022
    %v1025 = vxor.u32 %v1024, 2147483648
    %v1026 = vmul.f32 %v1025, 1.442695
    %v1027 = vpow.pop %v1026
    %v1028 = vadd.f32 %v1027, 1.0
    %v1029 = vrcp.pop %v1028
    %v1030 = vmul.f32 %v1028, %v1029
    %v1031 = vsub.f32 1.0, %v1030
    %v1032 = vmul.f32 %v1029, %v1031
    %v1033 = vadd.f32 %v1029, %v1032
    %vm1034 = vweird.f32 %v1028
    %vm1035 = vweird.f32 %v1029
    %vm1036 = vmor %vm1034, %vm1035
    %v1037 = vsel %vm1036, %v1029, %v1033
    %v1038 = vand.u32 2147483647, %v1028
    %vm1039 = vcmp.eq.f32.partialorder %v1038, 8.507059e+37
    %v1040 = vand.u32 %v1028, 2147483648
    %v1041 = vor.u32 1.1754944e-38, %v1040
    %v1042 = vsel %vm1039, %v1041, %v1037
    %v1043 = vmul.f32 1.0, %v1042
    %v1044 = vtanh.pop %v1024
    %v1046 = vrot.slane %v1043, 1
    %v1048 = vmul.f32 %v1046, %v861
    %v1050 = vrot.slane %v1044, 2
    %v1052 = vmul.f32 %v1043, %v1050
    %v1053 = vadd.f32 %v1048, %v1052
    %v1054 = vtanh.pop %v1053
    %v1055 = vrot.slane %v1043, 3
    %v1057 = vmul.f32 %v1055, %v1054
    %1058 = vst [vmem:[#allocation3 + $0x4] sm:$0x1] %v1057
    %s1059 = scalar_lea.vmem [#allocation2], 5
    %v1060 = vld [vmem:[%s1059] ss:$8 sm:$0xf]
    %v1061 = vld [vmem:[#allocation9] sm:$0xff]
    %v1062 = vld [vmem:[#allocation9 + $0x8] sm:$0xff]
    %v1063 = vld [vmem:[#allocation9 + $0x10] sm:$0xff]
    %v1064 = vld [vmem:[#allocation9 + $0x18] sm:$0xff]
    %v1065 = vld [vmem:[#allocation9 + $0x20] sm:$0xff]
    %v1066 = vld [vmem:[#allocation9 + $0x28] sm:$0xff]
    %v1067 = vld [vmem:[#allocation9 + $0x30] sm:$0xff]
    %v1068 = vld [vmem:[#allocation9 + $0x38] sm:$0xff]
    %v1069 = vld [vmem:[#allocation9 + $0x40] sm:$0xff]
    %v1070 = vld [vmem:[#allocation9 + $0x48] sm:$0xff]
    %v1071 = vld [vmem:[#allocation9 + $0x50] sm:$0xff]
    %v1072 = vld [vmem:[#allocation9 + $0x58] sm:$0xff]
    %v1073 = vld [vmem:[#allocation9 + $0x60] sm:$0xff]
    %v1074 = vld [vmem:[#allocation9 + $0x68] sm:$0xff]
    %v1075 = vld [vmem:[#allocation9 + $0x70] sm:$0xff]
    %v1076 = vld [vmem:[#allocation9 + $0x78] sm:$0xff]
    %v1077 = vld [vmem:[#allocation9 + $0x80] sm:$0xff]
    %v1078 = vld [vmem:[#allocation9 + $0x88] sm:$0xff]
    %v1079 = vld [vmem:[#allocation9 + $0x90] sm:$0xff]
    %v1080 = vld [vmem:[#allocation9 + $0x98] sm:$0xff]
    %v1081 = vld [vmem:[#allocation9 + $0xa0] sm:$0xff]
    %v1082 = vld [vmem:[#allocation9 + $0xa8] sm:$0xff]
    %v1083 = vld [vmem:[#allocation9 + $0xb0] sm:$0xff]
    %v1084 = vld [vmem:[#allocation9 + $0xb8] sm:$0xff]
    %v1085 = vld [vmem:[#allocation9 + $0xc0] sm:$0xff]
    %v1086 = vld [vmem:[#allocation9 + $0xc8] sm:$0xff]
    %v1087 = vld [vmem:[#allocation9 + $0xd0] sm:$0xff]
    %v1088 = vld [vmem:[#allocation9 + $0xd8] sm:$0xff]
    %v1089 = vld [vmem:[#allocation9 + $0xe0] sm:$0xff]
    %v1090 = vld [vmem:[#allocation9 + $0xe8] sm:$0xff]
    %v1091 = vld [vmem:[#allocation9 + $0xf0] sm:$0xff]
    %v1092 = vld [vmem:[#allocation9 + $0xf8] sm:$0xff]
    %v1093 = vld [vmem:[#allocation9 + $0x100] sm:$0xff]
    %v1094 = vld [vmem:[#allocation9 + $0x108] sm:$0xff]
    %v1095 = vld [vmem:[#allocation9 + $0x110] sm:$0xff]
    %v1096 = vld [vmem:[#allocation9 + $0x118] sm:$0xff]
    %v1097 = vld [vmem:[#allocation9 + $0x120] sm:$0xff]
    %v1098 = vld [vmem:[#allocation9 + $0x128] sm:$0xff]
    %v1099 = vld [vmem:[#allocation9 + $0x130] sm:$0xff]
    %v1100 = vld [vmem:[#allocation9 + $0x138] sm:$0xff]
    %v1101 = vld [vmem:[#allocation9 + $0x140] sm:$0xff]
    %v1102 = vld [vmem:[#allocation9 + $0x148] sm:$0xff]
    %v1103 = vld [vmem:[#allocation9 + $0x150] sm:$0xff]
    %v1104 = vld [vmem:[#allocation9 + $0x158] sm:$0xff]
    %v1105 = vld [vmem:[#allocation9 + $0x160] sm:$0xff]
    %v1106 = vld [vmem:[#allocation9 + $0x168] sm:$0xff]
    %v1107 = vld [vmem:[#allocation9 + $0x170] sm:$0xff]
    %v1108 = vld [vmem:[#allocation9 + $0x178] sm:$0xff]
    %v1109 = vld [vmem:[#allocation9 + $0x180] sm:$0xff]
    %v1110 = vld [vmem:[#allocation9 + $0x188] sm:$0xff]
    %v1111 = vld [vmem:[#allocation9 + $0x190] sm:$0xff]
    %v1112 = vld [vmem:[#allocation9 + $0x198] sm:$0xff]
    %v1113 = vld [vmem:[#allocation9 + $0x1a0] sm:$0xff]
    %v1114 = vld [vmem:[#allocation9 + $0x1a8] sm:$0xff]
    %v1115 = vld [vmem:[#allocation9 + $0x1b0] sm:$0xff]
    %v1116 = vld [vmem:[#allocation9 + $0x1b8] sm:$0xff]
    %v1117 = vld [vmem:[#allocation9 + $0x1c0] sm:$0xff]
    %v1118 = vld [vmem:[#allocation9 + $0x1c8] sm:$0xff]
    %v1119 = vld [vmem:[#allocation9 + $0x1d0] sm:$0xff]
    %v1120 = vld [vmem:[#allocation9 + $0x1d8] sm:$0xff]
    %v1121 = vld [vmem:[#allocation9 + $0x1e0] sm:$0xff]
    %v1122 = vld [vmem:[#allocation9 + $0x1e8] sm:$0xff]
    %v1123 = vld [vmem:[#allocation9 + $0x1f0] sm:$0xff]
    %v1124 = vld [vmem:[#allocation9 + $0x1f8] sm:$0xff]
    %1125 = vmatpush.msra.mxu0 %v1121
    %1126 = vmatpush.msra.mxu0 %v1117
    %1127 = vmatpush.msra.mxu0 %v1113
    %1128 = vmatpush.msra.mxu0 %v1109
    %1129 = vmatpush.msra.mxu0 %v1105
    %1130 = vmatpush.msra.mxu0 %v1101
    %1131 = vmatpush.msra.mxu0 %v1097
    %1132 = vmatpush.msra.mxu0 %v1093
    %1133 = vmatpush.msra.mxu0 %v1089
    %1134 = vmatpush.msra.mxu0 %v1085
    %1135 = vmatpush.msra.mxu0 %v1081
    %1136 = vmatpush.msra.mxu0 %v1077
    %1137 = vmatpush.msra.mxu0 %v1073
    %1138 = vmatpush.msra.mxu0 %v1069
    %1139 = vmatpush.msra.mxu0 %v1065
    %1140 = vmatpush.msra.mxu0 %v1061
    %1141 = vmatmul.f32.gmra.mxu0 %v1057
    %v1142 = vpop.f32.mrf.mxu0
    %v1143 = vadd.f32 0.0, %v1142
    %1144 = vdwg.mxu0
    %1145 = vmatpush.msra.mxu0 %v1122
    %1146 = vmatpush.msra.mxu0 %v1118
    %1147 = vmatpush.msra.mxu0 %v1114
    %1148 = vmatpush.msra.mxu0 %v1110
    %1149 = vmatpush.msra.mxu0 %v1106
    %1150 = vmatpush.msra.mxu0 %v1102
    %1151 = vmatpush.msra.mxu0 %v1098
    %1152 = vmatpush.msra.mxu0 %v1094
    %1153 = vmatpush.msra.mxu0 %v1090
    %1154 = vmatpush.msra.mxu0 %v1086
    %1155 = vmatpush.msra.mxu0 %v1082
    %1156 = vmatpush.msra.mxu0 %v1078
    %1157 = vmatpush.msra.mxu0 %v1074
    %1158 = vmatpush.msra.mxu0 %v1070
    %1159 = vmatpush.msra.mxu0 %v1066
    %1160 = vmatpush.msra.mxu0 %v1062
    %1161 = vmatmul.f32.gmra.mxu0 %v1057
    %v1162 = vpop.f32.mrf.mxu0
    %v1163 = vadd.f32 0.0, %v1162
    %1164 = vdwg.mxu0
    %1165 = vmatpush.msra.mxu0 %v1123
    %1166 = vmatpush.msra.mxu0 %v1119
    %1167 = vmatpush.msra.mxu0 %v1115
    %1168 = vmatpush.msra.mxu0 %v1111
    %1169 = vmatpush.msra.mxu0 %v1107
    %1170 = vmatpush.msra.mxu0 %v1103
    %1171 = vmatpush.msra.mxu0 %v1099
    %1172 = vmatpush.msra.mxu0 %v1095
    %1173 = vmatpush.msra.mxu0 %v1091
    %1174 = vmatpush.msra.mxu0 %v1087
    %1175 = vmatpush.msra.mxu0 %v1083
    %1176 = vmatpush.msra.mxu0 %v1079
    %1177 = vmatpush.msra.mxu0 %v1075
    %1178 = vmatpush.msra.mxu0 %v1071
    %1179 = vmatpush.msra.mxu0 %v1067
    %1180 = vmatpush.msra.mxu0 %v1063
    %1181 = vmatmul.f32.gmra.mxu0 %v1057
    %v1182 = vpop.f32.mrf.mxu0
    %v1183 = vadd.f32 0.0, %v1182
    %1184 = vdwg.mxu0
    %1185 = vmatpush.msra.mxu0 %v1124
    %1186 = vmatpush.msra.mxu0 %v1120
    %1187 = vmatpush.msra.mxu0 %v1116
    %1188 = vmatpush.msra.mxu0 %v1112
    %1189 = vmatpush.msra.mxu0 %v1108
    %1190 = vmatpush.msra.mxu0 %v1104
    %1191 = vmatpush.msra.mxu0 %v1100
    %1192 = vmatpush.msra.mxu0 %v1096
    %1193 = vmatpush.msra.mxu0 %v1092
    %1194 = vmatpush.msra.mxu0 %v1088
    %1195 = vmatpush.msra.mxu0 %v1084
    %1196 = vmatpush.msra.mxu0 %v1080
    %1197 = vmatpush.msra.mxu0 %v1076
    %1198 = vmatpush.msra.mxu0 %v1072
    %1199 = vmatpush.msra.mxu0 %v1068
    %1200 = vmatpush.msra.mxu0 %v1064
    %1201 = vmatmul.f32.gmra.mxu0 %v1057
    %v1202 = vpop.f32.mrf.mxu0
    %v1203 = vadd.f32 0.0, %v1202
    %1204 = vdwg.mxu0
    %v1209 = vrot.slane %v1163, 7
    %v1210 = vrot.slane %v1183, 6
    %v1211 = vrot.slane %v1203, 5
    %v1212 = vsel %vm441, %v1143, %v1209
    %v1213 = vsel %vm443, %v1210, %v1211
    %v1214 = vsel %vm445, %v1212, %v1213
    %v1216 = vadd.f32 %v1060, %v1214
    %v1217 = vxor.u32 %v1216, 2147483648
    %v1218 = vmul.f32 %v1217, 1.442695
    %v1219 = vpow.pop %v1218
    %v1220 = vadd.f32 %v1219, 1.0
    %v1221 = vrcp.pop %v1220
    %v1222 = vmul.f32 %v1220, %v1221
    %v1223 = vsub.f32 1.0, %v1222
    %v1224 = vmul.f32 %v1221, %v1223
    %v1225 = vadd.f32 %v1221, %v1224
    %vm1226 = vweird.f32 %v1220
    %vm1227 = vweird.f32 %v1221
    %vm1228 = vmor %vm1226, %vm1227
    %v1229 = vsel %vm1228, %v1221, %v1225
    %v1230 = vand.u32 2147483647, %v1220
    %vm1231 = vcmp.eq.f32.partialorder %v1230, 8.507059e+37
    %v1232 = vand.u32 %v1220, 2147483648
    %v1233 = vor.u32 1.1754944e-38, %v1232
    %v1234 = vsel %vm1231, %v1233, %v1229
    %v1235 = vmul.f32 1.0, %v1234
    %v1236 = vtanh.pop %v1216
    %v1238 = vrot.slane %v1235, 1
    %v1240 = vmul.f32 %v1238, %v1053
    %v1242 = vrot.slane %v1236, 2
    %v1244 = vmul.f32 %v1235, %v1242
    %v1245 = vadd.f32 %v1240, %v1244
    %v1246 = vtanh.pop %v1245
    %v1247 = vrot.slane %v1235, 3
    %v1249 = vmul.f32 %v1247, %v1246
    %1250 = vst [vmem:[#allocation3 + $0x5] sm:$0x1] %v1249
    %s1251 = scalar_lea.vmem [#allocation2], 6
    %v1252 = vld [vmem:[%s1251] ss:$8 sm:$0xf]
    %v1253 = vld [vmem:[#allocation9] sm:$0xff]
    %v1254 = vld [vmem:[#allocation9 + $0x8] sm:$0xff]
    %v1255 = vld [vmem:[#allocation9 + $0x10] sm:$0xff]
    %v1256 = vld [vmem:[#allocation9 + $0x18] sm:$0xff]
    %v1257 = vld [vmem:[#allocation9 + $0x20] sm:$0xff]
    %v1258 = vld [vmem:[#allocation9 + $0x28] sm:$0xff]
    %v1259 = vld [vmem:[#allocation9 + $0x30] sm:$0xff]
    %v1260 = vld [vmem:[#allocation9 + $0x38] sm:$0xff]
    %v1261 = vld [vmem:[#allocation9 + $0x40] sm:$0xff]
    %v1262 = vld [vmem:[#allocation9 + $0x48] sm:$0xff]
    %v1263 = vld [vmem:[#allocation9 + $0x50] sm:$0xff]
    %v1264 = vld [vmem:[#allocation9 + $0x58] sm:$0xff]
    %v1265 = vld [vmem:[#allocation9 + $0x60] sm:$0xff]
    %v1266 = vld [vmem:[#allocation9 + $0x68] sm:$0xff]
    %v1267 = vld [vmem:[#allocation9 + $0x70] sm:$0xff]
    %v1268 = vld [vmem:[#allocation9 + $0x78] sm:$0xff]
    %v1269 = vld [vmem:[#allocation9 + $0x80] sm:$0xff]
    %v1270 = vld [vmem:[#allocation9 + $0x88] sm:$0xff]
    %v1271 = vld [vmem:[#allocation9 + $0x90] sm:$0xff]
    %v1272 = vld [vmem:[#allocation9 + $0x98] sm:$0xff]
    %v1273 = vld [vmem:[#allocation9 + $0xa0] sm:$0xff]
    %v1274 = vld [vmem:[#allocation9 + $0xa8] sm:$0xff]
    %v1275 = vld [vmem:[#allocation9 + $0xb0] sm:$0xff]
    %v1276 = vld [vmem:[#allocation9 + $0xb8] sm:$0xff]
    %v1277 = vld [vmem:[#allocation9 + $0xc0] sm:$0xff]
    %v1278 = vld [vmem:[#allocation9 + $0xc8] sm:$0xff]
    %v1279 = vld [vmem:[#allocation9 + $0xd0] sm:$0xff]
    %v1280 = vld [vmem:[#allocation9 + $0xd8] sm:$0xff]
    %v1281 = vld [vmem:[#allocation9 + $0xe0] sm:$0xff]
    %v1282 = vld [vmem:[#allocation9 + $0xe8] sm:$0xff]
    %v1283 = vld [vmem:[#allocation9 + $0xf0] sm:$0xff]
    %v1284 = vld [vmem:[#allocation9 + $0xf8] sm:$0xff]
    %v1285 = vld [vmem:[#allocation9 + $0x100] sm:$0xff]
    %v1286 = vld [vmem:[#allocation9 + $0x108] sm:$0xff]
    %v1287 = vld [vmem:[#allocation9 + $0x110] sm:$0xff]
    %v1288 = vld [vmem:[#allocation9 + $0x118] sm:$0xff]
    %v1289 = vld [vmem:[#allocation9 + $0x120] sm:$0xff]
    %v1290 = vld [vmem:[#allocation9 + $0x128] sm:$0xff]
    %v1291 = vld [vmem:[#allocation9 + $0x130] sm:$0xff]
    %v1292 = vld [vmem:[#allocation9 + $0x138] sm:$0xff]
    %v1293 = vld [vmem:[#allocation9 + $0x140] sm:$0xff]
    %v1294 = vld [vmem:[#allocation9 + $0x148] sm:$0xff]
    %v1295 = vld [vmem:[#allocation9 + $0x150] sm:$0xff]
    %v1296 = vld [vmem:[#allocation9 + $0x158] sm:$0xff]
    %v1297 = vld [vmem:[#allocation9 + $0x160] sm:$0xff]
    %v1298 = vld [vmem:[#allocation9 + $0x168] sm:$0xff]
    %v1299 = vld [vmem:[#allocation9 + $0x170] sm:$0xff]
    %v1300 = vld [vmem:[#allocation9 + $0x178] sm:$0xff]
    %v1301 = vld [vmem:[#allocation9 + $0x180] sm:$0xff]
    %v1302 = vld [vmem:[#allocation9 + $0x188] sm:$0xff]
    %v1303 = vld [vmem:[#allocation9 + $0x190] sm:$0xff]
    %v1304 = vld [vmem:[#allocation9 + $0x198] sm:$0xff]
    %v1305 = vld [vmem:[#allocation9 + $0x1a0] sm:$0xff]
    %v1306 = vld [vmem:[#allocation9 + $0x1a8] sm:$0xff]
    %v1307 = vld [vmem:[#allocation9 + $0x1b0] sm:$0xff]
    %v1308 = vld [vmem:[#allocation9 + $0x1b8] sm:$0xff]
    %v1309 = vld [vmem:[#allocation9 + $0x1c0] sm:$0xff]
    %v1310 = vld [vmem:[#allocation9 + $0x1c8] sm:$0xff]
    %v1311 = vld [vmem:[#allocation9 + $0x1d0] sm:$0xff]
    %v1312 = vld [vmem:[#allocation9 + $0x1d8] sm:$0xff]
    %v1313 = vld [vmem:[#allocation9 + $0x1e0] sm:$0xff]
    %v1314 = vld [vmem:[#allocation9 + $0x1e8] sm:$0xff]
    %v1315 = vld [vmem:[#allocation9 + $0x1f0] sm:$0xff]
    %v1316 = vld [vmem:[#allocation9 + $0x1f8] sm:$0xff]
    %1317 = vmatpush.msra.mxu0 %v1313
    %1318 = vmatpush.msra.mxu0 %v1309
    %1319 = vmatpush.msra.mxu0 %v1305
    %1320 = vmatpush.msra.mxu0 %v1301
    %1321 = vmatpush.msra.mxu0 %v1297
    %1322 = vmatpush.msra.mxu0 %v1293
    %1323 = vmatpush.msra.mxu0 %v1289
    %1324 = vmatpush.msra.mxu0 %v1285
    %1325 = vmatpush.msra.mxu0 %v1281
    %1326 = vmatpush.msra.mxu0 %v1277
    %1327 = vmatpush.msra.mxu0 %v1273
    %1328 = vmatpush.msra.mxu0 %v1269
    %1329 = vmatpush.msra.mxu0 %v1265
    %1330 = vmatpush.msra.mxu0 %v1261
    %1331 = vmatpush.msra.mxu0 %v1257
    %1332 = vmatpush.msra.mxu0 %v1253
    %1333 = vmatmul.f32.gmra.mxu0 %v1249
    %v1334 = vpop.f32.mrf.mxu0
    %v1335 = vadd.f32 0.0, %v1334
    %1336 = vdwg.mxu0
    %1337 = vmatpush.msra.mxu0 %v1314
    %1338 = vmatpush.msra.mxu0 %v1310
    %1339 = vmatpush.msra.mxu0 %v1306
    %1340 = vmatpush.msra.mxu0 %v1302
    %1341 = vmatpush.msra.mxu0 %v1298
    %1342 = vmatpush.msra.mxu0 %v1294
    %1343 = vmatpush.msra.mxu0 %v1290
    %1344 = vmatpush.msra.mxu0 %v1286
    %1345 = vmatpush.msra.mxu0 %v1282
    %1346 = vmatpush.msra.mxu0 %v1278
    %1347 = vmatpush.msra.mxu0 %v1274
    %1348 = vmatpush.msra.mxu0 %v1270
    %1349 = vmatpush.msra.mxu0 %v1266
    %1350 = vmatpush.msra.mxu0 %v1262
    %1351 = vmatpush.msra.mxu0 %v1258
    %1352 = vmatpush.msra.mxu0 %v1254
    %1353 = vmatmul.f32.gmra.mxu0 %v1249
    %v1354 = vpop.f32.mrf.mxu0
    %v1355 = vadd.f32 0.0, %v1354
    %1356 = vdwg.mxu0
    %1357 = vmatpush.msra.mxu0 %v1315
    %1358 = vmatpush.msra.mxu0 %v1311
    %1359 = vmatpush.msra.mxu0 %v1307
    %1360 = vmatpush.msra.mxu0 %v1303
    %1361 = vmatpush.msra.mxu0 %v1299
    %1362 = vmatpush.msra.mxu0 %v1295
    %1363 = vmatpush.msra.mxu0 %v1291
    %1364 = vmatpush.msra.mxu0 %v1287
    %1365 = vmatpush.msra.mxu0 %v1283
    %1366 = vmatpush.msra.mxu0 %v1279
    %1367 = vmatpush.msra.mxu0 %v1275
    %1368 = vmatpush.msra.mxu0 %v1271
    %1369 = vmatpush.msra.mxu0 %v1267
    %1370 = vmatpush.msra.mxu0 %v1263
    %1371 = vmatpush.msra.mxu0 %v1259
    %1372 = vmatpush.msra.mxu0 %v1255
    %1373 = vmatmul.f32.gmra.mxu0 %v1249
    %v1374 = vpop.f32.mrf.mxu0
    %v1375 = vadd.f32 0.0, %v1374
    %1376 = vdwg.mxu0
    %1377 = vmatpush.msra.mxu0 %v1316
    %1378 = vmatpush.msra.mxu0 %v1312
    %1379 = vmatpush.msra.mxu0 %v1308
    %1380 = vmatpush.msra.mxu0 %v1304
    %1381 = vmatpush.msra.mxu0 %v1300
    %1382 = vmatpush.msra.mxu0 %v1296
    %1383 = vmatpush.msra.mxu0 %v1292
    %1384 = vmatpush.msra.mxu0 %v1288
    %1385 = vmatpush.msra.mxu0 %v1284
    %1386 = vmatpush.msra.mxu0 %v1280
    %1387 = vmatpush.msra.mxu0 %v1276
    %1388 = vmatpush.msra.mxu0 %v1272
    %1389 = vmatpush.msra.mxu0 %v1268
    %1390 = vmatpush.msra.mxu0 %v1264
    %1391 = vmatpush.msra.mxu0 %v1260
    %1392 = vmatpush.msra.mxu0 %v1256
    %1393 = vmatmul.f32.gmra.mxu0 %v1249
    %v1394 = vpop.f32.mrf.mxu0
    %v1395 = vadd.f32 0.0, %v1394
    %1396 = vdwg.mxu0
    %v1401 = vrot.slane %v1355, 7
    %v1402 = vrot.slane %v1375, 6
    %v1403 = vrot.slane %v1395, 5
    %v1404 = vsel %vm441, %v1335, %v1401
    %v1405 = vsel %vm443, %v1402, %v1403
    %v1406 = vsel %vm445, %v1404, %v1405
    %v1408 = vadd.f32 %v1252, %v1406
    %v1409 = vxor.u32 %v1408, 2147483648
    %v1410 = vmul.f32 %v1409, 1.442695
    %v1411 = vpow.pop %v1410
    %v1412 = vadd.f32 %v1411, 1.0
    %v1413 = vrcp.pop %v1412
    %v1414 = vmul.f32 %v1412, %v1413
    %v1415 = vsub.f32 1.0, %v1414
    %v1416 = vmul.f32 %v1413, %v1415
    %v1417 = vadd.f32 %v1413, %v1416
    %vm1418 = vweird.f32 %v1412
    %vm1419 = vweird.f32 %v1413
    %vm1420 = vmor %vm1418, %vm1419
    %v1421 = vsel %vm1420, %v1413, %v1417
    %v1422 = vand.u32 2147483647, %v1412
    %vm1423 = vcmp.eq.f32.partialorder %v1422, 8.507059e+37
    %v1424 = vand.u32 %v1412, 2147483648
    %v1425 = vor.u32 1.1754944e-38, %v1424
    %v1426 = vsel %vm1423, %v1425, %v1421
    %v1427 = vmul.f32 1.0, %v1426
    %v1428 = vtanh.pop %v1408
    %v1430 = vrot.slane %v1427, 1
    %v1432 = vmul.f32 %v1430, %v1245
    %v1434 = vrot.slane %v1428, 2
    %v1436 = vmul.f32 %v1427, %v1434
    %v1437 = vadd.f32 %v1432, %v1436
    %v1438 = vtanh.pop %v1437
    %v1439 = vrot.slane %v1427, 3
    %v1441 = vmul.f32 %v1439, %v1438
    %1442 = vst [vmem:[#allocation3 + $0x6] sm:$0x1] %v1441
    %s1443 = scalar_lea.vmem [#allocation2], 7
    %v1444 = vld [vmem:[%s1443] ss:$8 sm:$0xf]
    %v1445 = vld [vmem:[#allocation9] sm:$0xff]
    %v1446 = vld [vmem:[#allocation9 + $0x8] sm:$0xff]
    %v1447 = vld [vmem:[#allocation9 + $0x10] sm:$0xff]
    %v1448 = vld [vmem:[#allocation9 + $0x18] sm:$0xff]
    %v1449 = vld [vmem:[#allocation9 + $0x20] sm:$0xff]
    %v1450 = vld [vmem:[#allocation9 + $0x28] sm:$0xff]
    %v1451 = vld [vmem:[#allocation9 + $0x30] sm:$0xff]
    %v1452 = vld [vmem:[#allocation9 + $0x38] sm:$0xff]
    %v1453 = vld [vmem:[#allocation9 + $0x40] sm:$0xff]
    %v1454 = vld [vmem:[#allocation9 + $0x48] sm:$0xff]
    %v1455 = vld [vmem:[#allocation9 + $0x50] sm:$0xff]
    %v1456 = vld [vmem:[#allocation9 + $0x58] sm:$0xff]
    %v1457 = vld [vmem:[#allocation9 + $0x60] sm:$0xff]
    %v1458 = vld [vmem:[#allocation9 + $0x68] sm:$0xff]
    %v1459 = vld [vmem:[#allocation9 + $0x70] sm:$0xff]
    %v1460 = vld [vmem:[#allocation9 + $0x78] sm:$0xff]
    %v1461 = vld [vmem:[#allocation9 + $0x80] sm:$0xff]
    %v1462 = vld [vmem:[#allocation9 + $0x88] sm:$0xff]
    %v1463 = vld [vmem:[#allocation9 + $0x90] sm:$0xff]
    %v1464 = vld [vmem:[#allocation9 + $0x98] sm:$0xff]
    %v1465 = vld [vmem:[#allocation9 + $0xa0] sm:$0xff]
    %v1466 = vld [vmem:[#allocation9 + $0xa8] sm:$0xff]
    %v1467 = vld [vmem:[#allocation9 + $0xb0] sm:$0xff]
    %v1468 = vld [vmem:[#allocation9 + $0xb8] sm:$0xff]
    %v1469 = vld [vmem:[#allocation9 + $0xc0] sm:$0xff]
    %v1470 = vld [vmem:[#allocation9 + $0xc8] sm:$0xff]
    %v1471 = vld [vmem:[#allocation9 + $0xd0] sm:$0xff]
    %v1472 = vld [vmem:[#allocation9 + $0xd8] sm:$0xff]
    %v1473 = vld [vmem:[#allocation9 + $0xe0] sm:$0xff]
    %v1474 = vld [vmem:[#allocation9 + $0xe8] sm:$0xff]
    %v1475 = vld [vmem:[#allocation9 + $0xf0] sm:$0xff]
    %v1476 = vld [vmem:[#allocation9 + $0xf8] sm:$0xff]
    %v1477 = vld [vmem:[#allocation9 + $0x100] sm:$0xff]
    %v1478 = vld [vmem:[#allocation9 + $0x108] sm:$0xff]
    %v1479 = vld [vmem:[#allocation9 + $0x110] sm:$0xff]
    %v1480 = vld [vmem:[#allocation9 + $0x118] sm:$0xff]
    %v1481 = vld [vmem:[#allocation9 + $0x120] sm:$0xff]
    %v1482 = vld [vmem:[#allocation9 + $0x128] sm:$0xff]
    %v1483 = vld [vmem:[#allocation9 + $0x130] sm:$0xff]
    %v1484 = vld [vmem:[#allocation9 + $0x138] sm:$0xff]
    %v1485 = vld [vmem:[#allocation9 + $0x140] sm:$0xff]
    %v1486 = vld [vmem:[#allocation9 + $0x148] sm:$0xff]
    %v1487 = vld [vmem:[#allocation9 + $0x150] sm:$0xff]
    %v1488 = vld [vmem:[#allocation9 + $0x158] sm:$0xff]
    %v1489 = vld [vmem:[#allocation9 + $0x160] sm:$0xff]
    %v1490 = vld [vmem:[#allocation9 + $0x168] sm:$0xff]
    %v1491 = vld [vmem:[#allocation9 + $0x170] sm:$0xff]
    %v1492 = vld [vmem:[#allocation9 + $0x178] sm:$0xff]
    %v1493 = vld [vmem:[#allocation9 + $0x180] sm:$0xff]
    %v1494 = vld [vmem:[#allocation9 + $0x188] sm:$0xff]
    %v1495 = vld [vmem:[#allocation9 + $0x190] sm:$0xff]
    %v1496 = vld [vmem:[#allocation9 + $0x198] sm:$0xff]
    %v1497 = vld [vmem:[#allocation9 + $0x1a0] sm:$0xff]
    %v1498 = vld [vmem:[#allocation9 + $0x1a8] sm:$0xff]
    %v1499 = vld [vmem:[#allocation9 + $0x1b0] sm:$0xff]
    %v1500 = vld [vmem:[#allocation9 + $0x1b8] sm:$0xff]
    %v1501 = vld [vmem:[#allocation9 + $0x1c0] sm:$0xff]
    %v1502 = vld [vmem:[#allocation9 + $0x1c8] sm:$0xff]
    %v1503 = vld [vmem:[#allocation9 + $0x1d0] sm:$0xff]
    %v1504 = vld [vmem:[#allocation9 + $0x1d8] sm:$0xff]
    %v1505 = vld [vmem:[#allocation9 + $0x1e0] sm:$0xff]
    %v1506 = vld [vmem:[#allocation9 + $0x1e8] sm:$0xff]
    %v1507 = vld [vmem:[#allocation9 + $0x1f0] sm:$0xff]
    %v1508 = vld [vmem:[#allocation9 + $0x1f8] sm:$0xff]
    %1509 = vmatpush.msra.mxu0 %v1505
    %1510 = vmatpush.msra.mxu0 %v1501
    %1511 = vmatpush.msra.mxu0 %v1497
    %1512 = vmatpush.msra.mxu0 %v1493
    %1513 = vmatpush.msra.mxu0 %v1489
    %1514 = vmatpush.msra.mxu0 %v1485
    %1515 = vmatpush.msra.mxu0 %v1481
    %1516 = vmatpush.msra.mxu0 %v1477
    %1517 = vmatpush.msra.mxu0 %v1473
    %1518 = vmatpush.msra.mxu0 %v1469
    %1519 = vmatpush.msra.mxu0 %v1465
    %1520 = vmatpush.msra.mxu0 %v1461
    %1521 = vmatpush.msra.mxu0 %v1457
    %1522 = vmatpush.msra.mxu0 %v1453
    %1523 = vmatpush.msra.mxu0 %v1449
    %1524 = vmatpush.msra.mxu0 %v1445
    %1525 = vmatmul.f32.gmra.mxu0 %v1441
    %v1526 = vpop.f32.mrf.mxu0
    %v1527 = vadd.f32 0.0, %v1526
    %1528 = vdwg.mxu0
    %1529 = vmatpush.msra.mxu0 %v1506
    %1530 = vmatpush.msra.mxu0 %v1502
    %1531 = vmatpush.msra.mxu0 %v1498
    %1532 = vmatpush.msra.mxu0 %v1494
    %1533 = vmatpush.msra.mxu0 %v1490
    %1534 = vmatpush.msra.mxu0 %v1486
    %1535 = vmatpush.msra.mxu0 %v1482
    %1536 = vmatpush.msra.mxu0 %v1478
    %1537 = vmatpush.msra.mxu0 %v1474
    %1538 = vmatpush.msra.mxu0 %v1470
    %1539 = vmatpush.msra.mxu0 %v1466
    %1540 = vmatpush.msra.mxu0 %v1462
    %1541 = vmatpush.msra.mxu0 %v1458
    %1542 = vmatpush.msra.mxu0 %v1454
    %1543 = vmatpush.msra.mxu0 %v1450
    %1544 = vmatpush.msra.mxu0 %v1446
    %1545 = vmatmul.f32.gmra.mxu0 %v1441
    %v1546 = vpop.f32.mrf.mxu0
    %v1547 = vadd.f32 0.0, %v1546
    %1548 = vdwg.mxu0
    %1549 = vmatpush.msra.mxu0 %v1507
    %1550 = vmatpush.msra.mxu0 %v1503
    %1551 = vmatpush.msra.mxu0 %v1499
    %1552 = vmatpush.msra.mxu0 %v1495
    %1553 = vmatpush.msra.mxu0 %v1491
    %1554 = vmatpush.msra.mxu0 %v1487
    %1555 = vmatpush.msra.mxu0 %v1483
    %1556 = vmatpush.msra.mxu0 %v1479
    %1557 = vmatpush.msra.mxu0 %v1475
    %1558 = vmatpush.msra.mxu0 %v1471
    %1559 = vmatpush.msra.mxu0 %v1467
    %1560 = vmatpush.msra.mxu0 %v1463
    %1561 = vmatpush.msra.mxu0 %v1459
    %1562 = vmatpush.msra.mxu0 %v1455
    %1563 = vmatpush.msra.mxu0 %v1451
    %1564 = vmatpush.msra.mxu0 %v1447
    %1565 = vmatmul.f32.gmra.mxu0 %v1441
    %v1566 = vpop.f32.mrf.mxu0
    %v1567 = vadd.f32 0.0, %v1566
    %1568 = vdwg.mxu0
    %1569 = vmatpush.msra.mxu0 %v1508
    %1570 = vmatpush.msra.mxu0 %v1504
    %1571 = vmatpush.msra.mxu0 %v1500
    %1572 = vmatpush.msra.mxu0 %v1496
    %1573 = vmatpush.msra.mxu0 %v1492
    %1574 = vmatpush.msra.mxu0 %v1488
    %1575 = vmatpush.msra.mxu0 %v1484
    %1576 = vmatpush.msra.mxu0 %v1480
    %1577 = vmatpush.msra.mxu0 %v1476
    %1578 = vmatpush.msra.mxu0 %v1472
    %1579 = vmatpush.msra.mxu0 %v1468
    %1580 = vmatpush.msra.mxu0 %v1464
    %1581 = vmatpush.msra.mxu0 %v1460
    %1582 = vmatpush.msra.mxu0 %v1456
    %1583 = vmatpush.msra.mxu0 %v1452
    %1584 = vmatpush.msra.mxu0 %v1448
    %1585 = vmatmul.f32.gmra.mxu0 %v1441
    %v1586 = vpop.f32.mrf.mxu0
    %v1587 = vadd.f32 0.0, %v1586
    %1588 = vdwg.mxu0
    %v1593 = vrot.slane %v1547, 7
    %v1594 = vrot.slane %v1567, 6
    %v1595 = vrot.slane %v1587, 5
    %v1596 = vsel %vm441, %v1527, %v1593
    %v1597 = vsel %vm443, %v1594, %v1595
    %v1598 = vsel %vm445, %v1596, %v1597
    %v1600 = vadd.f32 %v1444, %v1598
    %v1601 = vxor.u32 %v1600, 2147483648
    %v1602 = vmul.f32 %v1601, 1.442695
    %v1603 = vpow.pop %v1602
    %v1604 = vadd.f32 %v1603, 1.0
    %v1605 = vrcp.pop %v1604
    %v1606 = vmul.f32 %v1604, %v1605
    %v1607 = vsub.f32 1.0, %v1606
    %v1608 = vmul.f32 %v1605, %v1607
    %v1609 = vadd.f32 %v1605, %v1608
    %vm1610 = vweird.f32 %v1604
    %vm1611 = vweird.f32 %v1605
    %vm1612 = vmor %vm1610, %vm1611
    %v1613 = vsel %vm1612, %v1605, %v1609
    %v1614 = vand.u32 2147483647, %v1604
    %vm1615 = vcmp.eq.f32.partialorder %v1614, 8.507059e+37
    %v1616 = vand.u32 %v1604, 2147483648
    %v1617 = vor.u32 1.1754944e-38, %v1616
    %v1618 = vsel %vm1615, %v1617, %v1613
    %v1619 = vmul.f32 1.0, %v1618
    %v1620 = vtanh.pop %v1600
    %v1622 = vrot.slane %v1619, 1
    %v1624 = vmul.f32 %v1622, %v1437
    %v1626 = vrot.slane %v1620, 2
    %v1628 = vmul.f32 %v1619, %v1626
    %v1629 = vadd.f32 %v1624, %v1628
    %v1630 = vtanh.pop %v1629
    %v1631 = vrot.slane %v1619, 3
    %v1633 = vmul.f32 %v1631, %v1630
    %1634 = vst [vmem:[#allocation3 + $0x7] sm:$0x1] %v1633
    %v1635 = vld [vmem:[#allocation3] sm:$0xff]
    %v1636 = vld [vmem:[#allocation12] sm:$0xff]
    %v1637 = vld [vmem:[#allocation12 + $0x8] sm:$0xff]
    %v1638 = vld [vmem:[#allocation12 + $0x10] sm:$0xff]
    %v1639 = vld [vmem:[#allocation12 + $0x18] sm:$0xff]
    %v1640 = vld [vmem:[#allocation12 + $0x20] sm:$0xff]
    %v1641 = vld [vmem:[#allocation12 + $0x28] sm:$0xff]
    %v1642 = vld [vmem:[#allocation12 + $0x30] sm:$0xff]
    %v1643 = vld [vmem:[#allocation12 + $0x38] sm:$0xff]
    %v1644 = vld [vmem:[#allocation12 + $0x40] sm:$0xff]
    %v1645 = vld [vmem:[#allocation12 + $0x48] sm:$0xff]
    %v1646 = vld [vmem:[#allocation12 + $0x50] sm:$0xff]
    %v1647 = vld [vmem:[#allocation12 + $0x58] sm:$0xff]
    %v1648 = vld [vmem:[#allocation12 + $0x60] sm:$0xff]
    %v1649 = vld [vmem:[#allocation12 + $0x68] sm:$0xff]
    %v1650 = vld [vmem:[#allocation12 + $0x70] sm:$0xff]
    %v1651 = vld [vmem:[#allocation12 + $0x78] sm:$0xff]
    %v1652 = vld [vmem:[%s5] sm:$0x1]
    %v1654 = vperm.slane %v1652, 0
    %1656 = vmatpush.msra.mxu0 %v1651
    %1657 = vmatpush.msra.mxu0 %v1650
    %1658 = vmatpush.msra.mxu0 %v1649
    %1659 = vmatpush.msra.mxu0 %v1648
    %1660 = vmatpush.msra.mxu0 %v1647
    %1661 = vmatpush.msra.mxu0 %v1646
    %1662 = vmatpush.msra.mxu0 %v1645
    %1663 = vmatpush.msra.mxu0 %v1644
    %1664 = vmatpush.msra.mxu0 %v1643
    %1665 = vmatpush.msra.mxu0 %v1642
    %1666 = vmatpush.msra.mxu0 %v1641
    %1667 = vmatpush.msra.mxu0 %v1640
    %1668 = vmatpush.msra.mxu0 %v1639
    %1669 = vmatpush.msra.mxu0 %v1638
    %1670 = vmatpush.msra.mxu0 %v1637
    %1671 = vmatpush.msra.mxu0 %v1636
    %1672 = vmatmul.f32.gmra.mxu0 %v1635
    %v1673 = vpop.f32.mrf.mxu0
    %v1674 = vadd.f32 %v1654, %v1673
    %1675 = vdwg.mxu0
    %v1676 = vlaneseq
    %v1677 = vand.u32 %v1676, 127
    %vm1678 = vcmp.lt.s32.totalorder %v1677, 8
    %v1679 = vsel %vm1678, %v1674, -1e+30
    %1680 = vmax.xlane.f32.xlu0 %v1679
    %v1681 = vpop.xlane.xlu0 %1680
    %v1682 = vsub.f32 %v1679, %v1681
    %v1683 = vmul.f32 %v1682, 1.442695
    %v1684 = vpow.pop %v1683
    %1685 = vadd.xlane.f32.xlu0 %v1684
    %v1686 = vpop.xlane.xlu0 %1685
    %v1687 = vrcp.pop %v1686
    %v1688 = vmul.f32 %v1684, %v1687
    %vm1689 = vcmask 64512
    %1690 = vst.msk [vmem:[#allocation13] sm:$0xff] %vm1689, %v1688
    // Predicated region
    $region46: #{tpu_custom_call.1} parent=1 // pred_check
      _
    $region47: #{tpu_custom_call.1} parent=1 // pred_check_branch
      %1692 = sbr.rel (0) target = $region49
    $region48: #{tpu_custom_call.1} parent=1 // pred_region
      %1694 = vsyncadd [#allocation6], 0
      %s1696 = sshll.u32 [#allocation13], 4
      %s1697 = int_to_ptr.vmem [resolvable:$true] %s1696
      %s1698 = sshll.u32 %s6, 4
      %s1699 = int_to_ptr.hbm [resolvable:$true] %s1698
      %1701 = dma.vmem_to_hbm [thread:$0]  %s1697, 128, %s1699, [#allocation6]
    $region49: #{tpu_custom_call.1} parent=1 // pred_fallthru
      _
    // Predicated region
    $region50: #{tpu_custom_call.1} parent=1 // pred_check
      _
    $region51: #{tpu_custom_call.1} parent=1 // pred_check_branch
      %1703 = sbr.rel (0) target = $region53
    $region52: #{tpu_custom_call.1} parent=1 // pred_region
      %1705 = dma.done [#allocation6], 128
    $region53: #{tpu_custom_call.1} parent=1 // pred_fallthru
      _
    %1706 = vsyncpa [#allocation5], 1
    %1707 = vsyncpa [#allocation8], 1
    %1708 = vsyncpa [#allocation11], 1
    %1709 = vsyncpa [#allocation6], 1

</llo_original>
